<compile_context>
chip_gen: v7x
topology: tpu7x:2x2x1
jax: 0.10.0
libtpu: 0.0.40
codegen_flags: <defaults>
</compile_context>

<pallas_src>
import jax
import jax.numpy as jnp
import numpy as np
from jax.experimental import pallas as pl
from jax.experimental.pallas import tpu as pltpu

# ---- model dimensions (module defaults, small) --------------------------------
EMB  = 32          # embedding_dim
H    = 64          # lstm_hidden_dim (default 64)
NN   = 32          # nn_hidden_dim  (default 32)
OUT  = 4           # output_dim     (default 4)
SEQ  = 8           # temprel.length (token count)
LSEQ = SEQ + 4     # tokens + 4 XML position markers fed to the LSTM
# lane-padded sizes (native 128-lane vregs)
HP, NNP, OUTP = 128, 128, 128
G4 = 4 * HP        # 512 = width of the padded, reordered gate vector


def lstm_xml_kernel(seq_ref,     # VMEM (LSEQ, EMB) f32 -- already interleaved LSTM input
                    w_ih_ref,    # VMEM (EMB, G4)  bf16 -- W_ih^T, gates (i,f,o,g), padded
                    w_hh_ref,    # VMEM (HP,  G4)  bf16 -- W_hh^T, gates (i,f,o,g), padded
                    w12_ref,     # VMEM (HP+NNP, NNP) bf16 -- rows [0:HP]=W1p, [HP:]=W2p
                    vec_ref,     # VMEM (2, G4)    f32  -- row0 bias; row1 [h0|c0|b1|b2]
                    out_ref):    # VMEM (1, OUT)   f32
    vec  = vec_ref[...]
    bias = vec[0:1, :]                    # (1, G4)  b_ih + b_hh (reordered, padded)
    h    = vec[1:2, 0 * HP:1 * HP]        # (1, HP)  h0 (f32)
    c    = vec[1:2, 1 * HP:2 * HP]        # (1, HP)  c0 (f32)
    b1   = vec[1:2, 2 * HP:3 * HP]        # (1, NNP)
    b2   = vec[1:2, 3 * HP:4 * HP]        # (1, OUTP)

    # Hoisted input-side gate matmul for all LSEQ interleaved positions,
    # bias folded in.  One (LSEQ, EMB) @ (EMB, G4) MXU op, kept as a value
    # (~8 vregs); no VMEM scratch, and per-step rows are sliced statically.
    xg_all = jnp.dot(seq_ref[...].astype(jnp.bfloat16), w_ih_ref[...],
                     preferred_element_type=jnp.float32) + bias   # (LSEQ, G4) f32

    # TODO(synk): explicit MXU RHS staging (pltpu.matmul_push_rhs / matmul_acc_lhs /
    # matmul_pop) would keep W_hh resident in the MXU weight registers across the
    # 12 unrolled steps; omitted here for portability across MXU geometries
    # (v5e 4x128^2 vs v6e/v7x 2x256^2).  bf16 weights already halve the streaming.
    for t in range(LSEQ):                 # fully unrolled recurrence (t static)
        gates = xg_all[t:t + 1, :] + jnp.dot(
            h.astype(jnp.bfloat16), w_hh_ref[...],   # ref read fed straight to MXU,
            preferred_element_type=jnp.float32)      # never hoisted into a 64-vreg value
        # gate columns were pre-reordered on the host to (i, f, o, g):
        # one sigmoid over 3 contiguous gates, one tanh over the cell gate.
        sig = jax.nn.sigmoid(gates[:, 0:3 * HP])                       # (1, 3*HP) f32
        g_c = jnp.tanh(gates[:, 3 * HP:4 * HP])                        # (1, HP)   f32
        i_g = sig[:, 0 * HP:1 * HP]
        f_g = sig[:, 1 * HP:2 * HP]
        o_g = sig[:, 2 * HP:3 * HP]
        c = f_g * c + i_g * g_c                                        # f32 elementwise
        h = o_g * jnp.tanh(c)

    # h_nn = relu(h_last @ W1^T + b1);  output = h_nn @ W2^T + b2   (padded)
    w1 = w12_ref[0:HP, :]                 # (HP, NNP)  bf16
    w2 = w12_ref[HP:HP + NNP, :]          # (NNP, OUTP) bf16
    h_nn = jnp.maximum(
        jnp.dot(h.astype(jnp.bfloat16), w1, preferred_element_type=jnp.float32) + b1,
        0.0)
    out = jnp.dot(h_nn.astype(jnp.bfloat16), w2,
                  preferred_element_type=jnp.float32) + b2             # (1, OUTP) f32
    out_ref[...] = out[:, :OUT]           # only the real OUT lanes are emitted


@jax.jit
def lstm_xml_forward(event_ix, embeds, pos_emb, w_ih_p, w_hh_p, w12_p, vec_pack):
    # Resolve the XML interleave in the wrapper: 12-entry source-row permutation
    # (vectorized where on event_ix), then gather [tokens ; pos_emb] into LSTM order.
    # TODO(synk): event_ix is assumed to satisfy 0 <= e0 < e1 < SEQ (as the PyTorch
    # module implicitly requires); no bounds check.
    e0 = event_ix[0]
    e1 = event_ix[1]
    t = jnp.arange(LSEQ, dtype=jnp.int32)
    src = jnp.where(t < e0, t,
          jnp.where(t == e0, SEQ + 0,
          jnp.where(t == e0 + 1, e0,
          jnp.where(t == e0 + 2, SEQ + 1,
          jnp.where(t <= e1 + 1, t - 2,
          jnp.where(t == e1 + 2, SEQ + 2,
          jnp.where(t == e1 + 3, e1,
          jnp.where(t == e1 + 4, SEQ + 3, t - 4))))))))
    seq = jnp.take(jnp.concatenate([embeds, pos_emb], axis=0), src, axis=0)  # (LSEQ, EMB)

    vmem = pl.BlockSpec(memory_space=pltpu.MemorySpace.VMEM)
    return pl.pallas_call(
        lstm_xml_kernel,
        out_shape=jax.ShapeDtypeStruct((1, OUT), jnp.float32),
        in_specs=[vmem, vmem, vmem, vmem, vmem],
        out_specs=vmem,
    )(seq, w_ih_p, w_hh_p, w12_p, vec_pack)


def pack_params(w_ih, w_hh, b_ih, b_hh, h0, c0, w1, b1, w2, b2):
    """One-time host prep: reorder LSTM gate blocks (i,f,g,o)->(i,f,o,g),
    zero-pad H/NN/OUT to 128 lanes, cast MXU weights to bf16, and pack the
    small operands into 4 kernel arrays."""
    def reorder_pad_gate_cols(w_t):       # (K, 4H), cols in PyTorch order i,f,g,o
        i_ = w_t[:, 0 * H:1 * H]
        f_ = w_t[:, 1 * H:2 * H]
        g_ = w_t[:, 2 * H:3 * H]
        o_ = w_t[:, 3 * H:4 * H]
        padc = lambda x: jnp.pad(x, ((0, 0), (0, HP - H)))
        return jnp.concatenate([padc(i_), padc(f_), padc(o_), padc(g_)], axis=1)

    w_ih_p = reorder_pad_gate_cols(w_ih.T).astype(jnp.bfloat16)               # (EMB, G4)
    w_hh_p = jnp.pad(reorder_pad_gate_cols(w_hh.T),
                     ((0, HP - H), (0, 0))).astype(jnp.bfloat16)              # (HP, G4)
    bias_p = reorder_pad_gate_cols((b_ih + b_hh).reshape(1, 4 * H))           # (1, G4) f32

    h0_p = jnp.pad(h0, ((0, 0), (0, HP - H)))
    c0_p = jnp.pad(c0, ((0, 0), (0, HP - H)))
    b1_p = jnp.pad(b1.reshape(1, NN), ((0, 0), (0, NNP - NN)))
    b2_p = jnp.pad(b2.reshape(1, OUT), ((0, 0), (0, OUTP - OUT)))
    vec_pack = jnp.concatenate(
        [bias_p, jnp.concatenate([h0_p, c0_p, b1_p, b2_p], axis=1)],
        axis=0).astype(jnp.float32)                                           # (2, G4) f32

    w1_p = jnp.pad(w1.T, ((0, HP - H), (0, NNP - NN)))        # (HP, NNP)
    w2_p = jnp.pad(w2.T, ((0, NNP - NN), (0, OUTP - OUT)))    # (NNP, OUTP)
    w12_p = jnp.concatenate([w1_p, w2_p], axis=0).astype(jnp.bfloat16)        # (HP+NNP, NNP)
    return w_ih_p, w_hh_p, w12_p, vec_pack


def reference_forward(event_ix, embeds, pos_emb, h0, c0,
                      w_ih, w_hh, b_ih, b_hh, w1, b1, w2, b2):
    """Pure-JAX f32 mirror of lstm_NN_xml.forward with original param layout."""
    e0, e1 = int(event_ix[0]), int(event_ix[1])
    seq = jnp.concatenate([
        embeds[:e0],
        pos_emb[0:1], embeds[e0:e0 + 1], pos_emb[1:2],
        embeds[e0 + 1:e1],
        pos_emb[2:3], embeds[e1:e1 + 1], pos_emb[3:4],
        embeds[e1 + 1:],
    ], axis=0)                                                # (LSEQ, EMB)
    h, c = h0, c0
    for t in range(seq.shape[0]):
        x = seq[t:t + 1]
        gates = x @ w_ih.T + h @ w_hh.T + b_ih + b_hh         # PyTorch order i,f,g,o
        i = jax.nn.sigmoid(gates[:, 0 * H:1 * H])
        f = jax.nn.sigmoid(gates[:, 1 * H:2 * H])
        g = jnp.tanh(gates[:, 2 * H:3 * H])
        o = jax.nn.sigmoid(gates[:, 3 * H:4 * H])
        c = f * c + i * g
        h = o * jnp.tanh(c)
    h_nn = jnp.maximum(h @ w1.T + b1, 0.0)                    # Linear(H, NN) + ReLU
    return h_nn @ w2.T + b2                                   # Linear(NN, OUT)


if __name__ == "__main__":
    key = jax.random.PRNGKey(0)
    ks = jax.random.split(key, 16)

    def uniform(k, shape, scale):
        return jax.random.uniform(k, shape, jnp.float32, -scale, scale)

    # LSTM params (PyTorch layout: W_ih (4H,EMB), W_hh (4H,H), biases (4H,))
    s = 1.0 / np.sqrt(H)
    w_ih = uniform(ks[0], (4 * H, EMB), s)
    w_hh = uniform(ks[1], (4 * H, H), s)
    b_ih = uniform(ks[2], (4 * H,), s)
    b_hh = uniform(ks[3], (4 * H,), s)
    # Linear layers: h_lstm2h_nn (NN,H), h_nn2o (OUT,NN)
    s1 = 1.0 / np.sqrt(H)
    w1 = uniform(ks[4], (NN, H), s1)
    b1 = uniform(ks[5], (NN,), s1)
    s2 = 1.0 / np.sqrt(NN)
    w2 = uniform(ks[6], (OUT, NN), s2)
    b2 = uniform(ks[7], (OUT,), s2)
    # position_emb = nn.Embedding(4, EMB) weight; init_hidden uses torch.randn
    pos_emb = jax.random.normal(ks[8], (4, EMB), jnp.float32)
    h0 = jax.random.normal(ks[9], (1, H), jnp.float32)
    c0 = jax.random.normal(ks[10], (1, H), jnp.float32)
    # per-example inputs: token embeddings and the two event indices
    embeds = jax.random.normal(ks[11], (SEQ, EMB), jnp.float32)
    event_ix = jnp.array([2, 5], dtype=jnp.int32)

    # one-time host-side packing into kernel-friendly (padded, reordered, bf16) forms
    w_ih_p, w_hh_p, w12_p, vec_pack = pack_params(
        w_ih, w_hh, b_ih, b_hh, h0, c0, w1, b1, w2, b2)

    out = lstm_xml_forward(event_ix, embeds, pos_emb,
                           w_ih_p, w_hh_p, w12_p, vec_pack)
    out = jax.block_until_ready(out)

    ref = reference_forward(event_ix, embeds, pos_emb, h0, c0,
                            w_ih, w_hh, b_ih, b_hh, w1, b1, w2, b2)
    assert out.shape == (1, OUT)
    # bf16 MXU operands (f32 accumulation / f32 elementwise) vs. an all-f32
    # reference: tolerance widened to bf16 scale as flagged in the review.
    np.testing.assert_allclose(np.asarray(out), np.asarray(ref),
                               rtol=2e-2, atol=2e-2)
    print("KERNEL_OK")
</pallas_src>

<mosaic_0001>
module attributes {stable_mosaic.version = 11 : i64} {
  func.func @lstm_xml_kernel(%arg0: memref<12x32xf32, #tpu.memory_space<vmem>>, %arg1: memref<32x512xbf16, #tpu.memory_space<vmem>>, %arg2: memref<128x512xbf16, #tpu.memory_space<vmem>>, %arg3: memref<256x128xbf16, #tpu.memory_space<vmem>>, %arg4: memref<2x512xf32, #tpu.memory_space<vmem>>, %arg5: memref<1x4xf32, #tpu.memory_space<vmem>>) attributes {dimension_semantics = [], scalar_prefetch = 0 : i64, scratch_operands = 0 : i64, tpu.core_type = #tpu.core_type<tc>} {
    %c0 = arith.constant 0 : index
    %c0_0 = arith.constant 0 : index
    %0 = vector.load %arg4[%c0, %c0_0] : memref<2x512xf32, #tpu.memory_space<vmem>>, vector<2x512xf32>
    %1 = vector.extract_strided_slice %0 {offsets = [0, 0], sizes = [1, 512], strides = [1, 1]} : vector<2x512xf32> to vector<1x512xf32>
    %2 = vector.extract_strided_slice %0 {offsets = [1, 0], sizes = [1, 128], strides = [1, 1]} : vector<2x512xf32> to vector<1x128xf32>
    %3 = vector.extract_strided_slice %0 {offsets = [1, 128], sizes = [1, 128], strides = [1, 1]} : vector<2x512xf32> to vector<1x128xf32>
    %4 = vector.extract_strided_slice %0 {offsets = [1, 256], sizes = [1, 128], strides = [1, 1]} : vector<2x512xf32> to vector<1x128xf32>
    %5 = vector.extract_strided_slice %0 {offsets = [1, 384], sizes = [1, 128], strides = [1, 1]} : vector<2x512xf32> to vector<1x128xf32>
    %c0_1 = arith.constant 0 : index
    %c0_2 = arith.constant 0 : index
    %6 = vector.load %arg0[%c0_1, %c0_2] : memref<12x32xf32, #tpu.memory_space<vmem>>, vector<12x32xf32>
    %7 = arith.truncf %6 : vector<12x32xf32> to vector<12x32xbf16>
    %c0_3 = arith.constant 0 : index
    %c0_4 = arith.constant 0 : index
    %8 = vector.load %arg1[%c0_3, %c0_4] : memref<32x512xbf16, #tpu.memory_space<vmem>>, vector<32x512xbf16>
    %cst = arith.constant dense<0.000000e+00> : vector<12x512xf32>
    %9 = tpu.matmul %7, %8, %cst {dimension_numbers = #tpu.dot_dimension_numbers<[1], [0], [0], [1], [0, 0, 1, 1], [], []>} : vector<12x32xbf16>, vector<32x512xbf16>, vector<12x512xf32> -> vector<12x512xf32>
    %10 = vector.broadcast %1 : vector<1x512xf32> to vector<12x512xf32>
    %11 = arith.addf %9, %10 : vector<12x512xf32>
    %12 = vector.extract_strided_slice %11 {offsets = [0, 0], sizes = [1, 512], strides = [1, 1]} : vector<12x512xf32> to vector<1x512xf32>
    %13 = arith.truncf %2 : vector<1x128xf32> to vector<1x128xbf16>
    %c0_5 = arith.constant 0 : index
    %c0_6 = arith.constant 0 : index
    %14 = vector.load %arg2[%c0_5, %c0_6] : memref<128x512xbf16, #tpu.memory_space<vmem>>, vector<128x512xbf16>
    %cst_7 = arith.constant dense<0.000000e+00> : vector<1x512xf32>
    %15 = tpu.matmul %13, %14, %cst_7 {dimension_numbers = #tpu.dot_dimension_numbers<[1], [0], [0], [1], [0, 0, 1, 1], [], []>} : vector<1x128xbf16>, vector<128x512xbf16>, vector<1x512xf32> -> vector<1x512xf32>
    %16 = arith.addf %12, %15 : vector<1x512xf32>
    %17 = vector.extract_strided_slice %16 {offsets = [0, 0], sizes = [1, 384], strides = [1, 1]} : vector<1x512xf32> to vector<1x384xf32>
    %18 = arith.negf %17 : vector<1x384xf32>
    %19 = math.exp %18 : vector<1x384xf32>
    %cst_8 = arith.constant 1.000000e+00 : f32
    %20 = vector.broadcast %cst_8 : f32 to vector<1x384xf32>
    %21 = arith.addf %20, %19 : vector<1x384xf32>
    %22 = arith.divf %20, %21 : vector<1x384xf32>
    %23 = vector.extract_strided_slice %16 {offsets = [0, 384], sizes = [1, 128], strides = [1, 1]} : vector<1x512xf32> to vector<1x128xf32>
    %24 = math.tanh %23 : vector<1x128xf32>
    %25 = vector.extract_strided_slice %22 {offsets = [0, 0], sizes = [1, 128], strides = [1, 1]} : vector<1x384xf32> to vector<1x128xf32>
    %26 = vector.extract_strided_slice %22 {offsets = [0, 128], sizes = [1, 128], strides = [1, 1]} : vector<1x384xf32> to vector<1x128xf32>
    %27 = vector.extract_strided_slice %22 {offsets = [0, 256], sizes = [1, 128], strides = [1, 1]} : vector<1x384xf32> to vector<1x128xf32>
    %28 = arith.mulf %26, %3 : vector<1x128xf32>
    %29 = arith.mulf %25, %24 : vector<1x128xf32>
    %30 = arith.addf %28, %29 : vector<1x128xf32>
    %31 = math.tanh %30 : vector<1x128xf32>
    %32 = arith.mulf %27, %31 : vector<1x128xf32>
    %33 = vector.extract_strided_slice %11 {offsets = [1, 0], sizes = [1, 512], strides = [1, 1]} : vector<12x512xf32> to vector<1x512xf32>
    %34 = arith.truncf %32 : vector<1x128xf32> to vector<1x128xbf16>
    %c0_9 = arith.constant 0 : index
    %c0_10 = arith.constant 0 : index
    %35 = vector.load %arg2[%c0_9, %c0_10] : memref<128x512xbf16, #tpu.memory_space<vmem>>, vector<128x512xbf16>
    %cst_11 = arith.constant dense<0.000000e+00> : vector<1x512xf32>
    %36 = tpu.matmul %34, %35, %cst_11 {dimension_numbers = #tpu.dot_dimension_numbers<[1], [0], [0], [1], [0, 0, 1, 1], [], []>} : vector<1x128xbf16>, vector<128x512xbf16>, vector<1x512xf32> -> vector<1x512xf32>
    %37 = arith.addf %33, %36 : vector<1x512xf32>
    %38 = vector.extract_strided_slice %37 {offsets = [0, 0], sizes = [1, 384], strides = [1, 1]} : vector<1x512xf32> to vector<1x384xf32>
    %39 = arith.negf %38 : vector<1x384xf32>
    %40 = math.exp %39 : vector<1x384xf32>
    %cst_12 = arith.constant 1.000000e+00 : f32
    %41 = vector.broadcast %cst_12 : f32 to vector<1x384xf32>
    %42 = arith.addf %41, %40 : vector<1x384xf32>
    %43 = arith.divf %41, %42 : vector<1x384xf32>
    %44 = vector.extract_strided_slice %37 {offsets = [0, 384], sizes = [1, 128], strides = [1, 1]} : vector<1x512xf32> to vector<1x128xf32>
    %45 = math.tanh %44 : vector<1x128xf32>
    %46 = vector.extract_strided_slice %43 {offsets = [0, 0], sizes = [1, 128], strides = [1, 1]} : vector<1x384xf32> to vector<1x128xf32>
    %47 = vector.extract_strided_slice %43 {offsets = [0, 128], sizes = [1, 128], strides = [1, 1]} : vector<1x384xf32> to vector<1x128xf32>
    %48 = vector.extract_strided_slice %43 {offsets = [0, 256], sizes = [1, 128], strides = [1, 1]} : vector<1x384xf32> to vector<1x128xf32>
    %49 = arith.mulf %47, %30 : vector<1x128xf32>
    %50 = arith.mulf %46, %45 : vector<1x128xf32>
    %51 = arith.addf %49, %50 : vector<1x128xf32>
    %52 = math.tanh %51 : vector<1x128xf32>
    %53 = arith.mulf %48, %52 : vector<1x128xf32>
    %54 = vector.extract_strided_slice %11 {offsets = [2, 0], sizes = [1, 512], strides = [1, 1]} : vector<12x512xf32> to vector<1x512xf32>
    %55 = arith.truncf %53 : vector<1x128xf32> to vector<1x128xbf16>
    %c0_13 = arith.constant 0 : index
    %c0_14 = arith.constant 0 : index
    %56 = vector.load %arg2[%c0_13, %c0_14] : memref<128x512xbf16, #tpu.memory_space<vmem>>, vector<128x512xbf16>
    %cst_15 = arith.constant dense<0.000000e+00> : vector<1x512xf32>
    %57 = tpu.matmul %55, %56, %cst_15 {dimension_numbers = #tpu.dot_dimension_numbers<[1], [0], [0], [1], [0, 0, 1, 1], [], []>} : vector<1x128xbf16>, vector<128x512xbf16>, vector<1x512xf32> -> vector<1x512xf32>
    %58 = arith.addf %54, %57 : vector<1x512xf32>
    %59 = vector.extract_strided_slice %58 {offsets = [0, 0], sizes = [1, 384], strides = [1, 1]} : vector<1x512xf32> to vector<1x384xf32>
    %60 = arith.negf %59 : vector<1x384xf32>
    %61 = math.exp %60 : vector<1x384xf32>
    %cst_16 = arith.constant 1.000000e+00 : f32
    %62 = vector.broadcast %cst_16 : f32 to vector<1x384xf32>
    %63 = arith.addf %62, %61 : vector<1x384xf32>
    %64 = arith.divf %62, %63 : vector<1x384xf32>
    %65 = vector.extract_strided_slice %58 {offsets = [0, 384], sizes = [1, 128], strides = [1, 1]} : vector<1x512xf32> to vector<1x128xf32>
    %66 = math.tanh %65 : vector<1x128xf32>
    %67 = vector.extract_strided_slice %64 {offsets = [0, 0], sizes = [1, 128], strides = [1, 1]} : vector<1x384xf32> to vector<1x128xf32>
    %68 = vector.extract_strided_slice %64 {offsets = [0, 128], sizes = [1, 128], strides = [1, 1]} : vector<1x384xf32> to vector<1x128xf32>
    %69 = vector.extract_strided_slice %64 {offsets = [0, 256], sizes = [1, 128], strides = [1, 1]} : vector<1x384xf32> to vector<1x128xf32>
    %70 = arith.mulf %68, %51 : vector<1x128xf32>
    %71 = arith.mulf %67, %66 : vector<1x128xf32>
    %72 = arith.addf %70, %71 : vector<1x128xf32>
    %73 = math.tanh %72 : vector<1x128xf32>
    %74 = arith.mulf %69, %73 : vector<1x128xf32>
    %75 = vector.extract_strided_slice %11 {offsets = [3, 0], sizes = [1, 512], strides = [1, 1]} : vector<12x512xf32> to vector<1x512xf32>
    %76 = arith.truncf %74 : vector<1x128xf32> to vector<1x128xbf16>
    %c0_17 = arith.constant 0 : index
    %c0_18 = arith.constant 0 : index
    %77 = vector.load %arg2[%c0_17, %c0_18] : memref<128x512xbf16, #tpu.memory_space<vmem>>, vector<128x512xbf16>
    %cst_19 = arith.constant dense<0.000000e+00> : vector<1x512xf32>
    %78 = tpu.matmul %76, %77, %cst_19 {dimension_numbers = #tpu.dot_dimension_numbers<[1], [0], [0], [1], [0, 0, 1, 1], [], []>} : vector<1x128xbf16>, vector<128x512xbf16>, vector<1x512xf32> -> vector<1x512xf32>
    %79 = arith.addf %75, %78 : vector<1x512xf32>
    %80 = vector.extract_strided_slice %79 {offsets = [0, 0], sizes = [1, 384], strides = [1, 1]} : vector<1x512xf32> to vector<1x384xf32>
    %81 = arith.negf %80 : vector<1x384xf32>
    %82 = math.exp %81 : vector<1x384xf32>
    %cst_20 = arith.constant 1.000000e+00 : f32
    %83 = vector.broadcast %cst_20 : f32 to vector<1x384xf32>
    %84 = arith.addf %83, %82 : vector<1x384xf32>
    %85 = arith.divf %83, %84 : vector<1x384xf32>
    %86 = vector.extract_strided_slice %79 {offsets = [0, 384], sizes = [1, 128], strides = [1, 1]} : vector<1x512xf32> to vector<1x128xf32>
    %87 = math.tanh %86 : vector<1x128xf32>
    %88 = vector.extract_strided_slice %85 {offsets = [0, 0], sizes = [1, 128], strides = [1, 1]} : vector<1x384xf32> to vector<1x128xf32>
    %89 = vector.extract_strided_slice %85 {offsets = [0, 128], sizes = [1, 128], strides = [1, 1]} : vector<1x384xf32> to vector<1x128xf32>
    %90 = vector.extract_strided_slice %85 {offsets = [0, 256], sizes = [1, 128], strides = [1, 1]} : vector<1x384xf32> to vector<1x128xf32>
    %91 = arith.mulf %89, %72 : vector<1x128xf32>
    %92 = arith.mulf %88, %87 : vector<1x128xf32>
    %93 = arith.addf %91, %92 : vector<1x128xf32>
    %94 = math.tanh %93 : vector<1x128xf32>
    %95 = arith.mulf %90, %94 : vector<1x128xf32>
    %96 = vector.extract_strided_slice %11 {offsets = [4, 0], sizes = [1, 512], strides = [1, 1]} : vector<12x512xf32> to vector<1x512xf32>
    %97 = arith.truncf %95 : vector<1x128xf32> to vector<1x128xbf16>
    %c0_21 = arith.constant 0 : index
    %c0_22 = arith.constant 0 : index
    %98 = vector.load %arg2[%c0_21, %c0_22] : memref<128x512xbf16, #tpu.memory_space<vmem>>, vector<128x512xbf16>
    %cst_23 = arith.constant dense<0.000000e+00> : vector<1x512xf32>
    %99 = tpu.matmul %97, %98, %cst_23 {dimension_numbers = #tpu.dot_dimension_numbers<[1], [0], [0], [1], [0, 0, 1, 1], [], []>} : vector<1x128xbf16>, vector<128x512xbf16>, vector<1x512xf32> -> vector<1x512xf32>
    %100 = arith.addf %96, %99 : vector<1x512xf32>
    %101 = vector.extract_strided_slice %100 {offsets = [0, 0], sizes = [1, 384], strides = [1, 1]} : vector<1x512xf32> to vector<1x384xf32>
    %102 = arith.negf %101 : vector<1x384xf32>
    %103 = math.exp %102 : vector<1x384xf32>
    %cst_24 = arith.constant 1.000000e+00 : f32
    %104 = vector.broadcast %cst_24 : f32 to vector<1x384xf32>
    %105 = arith.addf %104, %103 : vector<1x384xf32>
    %106 = arith.divf %104, %105 : vector<1x384xf32>
    %107 = vector.extract_strided_slice %100 {offsets = [0, 384], sizes = [1, 128], strides = [1, 1]} : vector<1x512xf32> to vector<1x128xf32>
    %108 = math.tanh %107 : vector<1x128xf32>
    %109 = vector.extract_strided_slice %106 {offsets = [0, 0], sizes = [1, 128], strides = [1, 1]} : vector<1x384xf32> to vector<1x128xf32>
    %110 = vector.extract_strided_slice %106 {offsets = [0, 128], sizes = [1, 128], strides = [1, 1]} : vector<1x384xf32> to vector<1x128xf32>
    %111 = vector.extract_strided_slice %106 {offsets = [0, 256], sizes = [1, 128], strides = [1, 1]} : vector<1x384xf32> to vector<1x128xf32>
    %112 = arith.mulf %110, %93 : vector<1x128xf32>
    %113 = arith.mulf %109, %108 : vector<1x128xf32>
    %114 = arith.addf %112, %113 : vector<1x128xf32>
    %115 = math.tanh %114 : vector<1x128xf32>
    %116 = arith.mulf %111, %115 : vector<1x128xf32>
    %117 = vector.extract_strided_slice %11 {offsets = [5, 0], sizes = [1, 512], strides = [1, 1]} : vector<12x512xf32> to vector<1x512xf32>
    %118 = arith.truncf %116 : vector<1x128xf32> to vector<1x128xbf16>
    %c0_25 = arith.constant 0 : index
    %c0_26 = arith.constant 0 : index
    %119 = vector.load %arg2[%c0_25, %c0_26] : memref<128x512xbf16, #tpu.memory_space<vmem>>, vector<128x512xbf16>
    %cst_27 = arith.constant dense<0.000000e+00> : vector<1x512xf32>
    %120 = tpu.matmul %118, %119, %cst_27 {dimension_numbers = #tpu.dot_dimension_numbers<[1], [0], [0], [1], [0, 0, 1, 1], [], []>} : vector<1x128xbf16>, vector<128x512xbf16>, vector<1x512xf32> -> vector<1x512xf32>
    %121 = arith.addf %117, %120 : vector<1x512xf32>
    %122 = vector.extract_strided_slice %121 {offsets = [0, 0], sizes = [1, 384], strides = [1, 1]} : vector<1x512xf32> to vector<1x384xf32>
    %123 = arith.negf %122 : vector<1x384xf32>
    %124 = math.exp %123 : vector<1x384xf32>
    %cst_28 = arith.constant 1.000000e+00 : f32
    %125 = vector.broadcast %cst_28 : f32 to vector<1x384xf32>
    %126 = arith.addf %125, %124 : vector<1x384xf32>
    %127 = arith.divf %125, %126 : vector<1x384xf32>
    %128 = vector.extract_strided_slice %121 {offsets = [0, 384], sizes = [1, 128], strides = [1, 1]} : vector<1x512xf32> to vector<1x128xf32>
    %129 = math.tanh %128 : vector<1x128xf32>
    %130 = vector.extract_strided_slice %127 {offsets = [0, 0], sizes = [1, 128], strides = [1, 1]} : vector<1x384xf32> to vector<1x128xf32>
    %131 = vector.extract_strided_slice %127 {offsets = [0, 128], sizes = [1, 128], strides = [1, 1]} : vector<1x384xf32> to vector<1x128xf32>
    %132 = vector.extract_strided_slice %127 {offsets = [0, 256], sizes = [1, 128], strides = [1, 1]} : vector<1x384xf32> to vector<1x128xf32>
    %133 = arith.mulf %131, %114 : vector<1x128xf32>
    %134 = arith.mulf %130, %129 : vector<1x128xf32>
    %135 = arith.addf %133, %134 : vector<1x128xf32>
    %136 = math.tanh %135 : vector<1x128xf32>
    %137 = arith.mulf %132, %136 : vector<1x128xf32>
    %138 = vector.extract_strided_slice %11 {offsets = [6, 0], sizes = [1, 512], strides = [1, 1]} : vector<12x512xf32> to vector<1x512xf32>
    %139 = arith.truncf %137 : vector<1x128xf32> to vector<1x128xbf16>
    %c0_29 = arith.constant 0 : index
    %c0_30 = arith.constant 0 : index
    %140 = vector.load %arg2[%c0_29, %c0_30] : memref<128x512xbf16, #tpu.memory_space<vmem>>, vector<128x512xbf16>
    %cst_31 = arith.constant dense<0.000000e+00> : vector<1x512xf32>
    %141 = tpu.matmul %139, %140, %cst_31 {dimension_numbers = #tpu.dot_dimension_numbers<[1], [0], [0], [1], [0, 0, 1, 1], [], []>} : vector<1x128xbf16>, vector<128x512xbf16>, vector<1x512xf32> -> vector<1x512xf32>
    %142 = arith.addf %138, %141 : vector<1x512xf32>
    %143 = vector.extract_strided_slice %142 {offsets = [0, 0], sizes = [1, 384], strides = [1, 1]} : vector<1x512xf32> to vector<1x384xf32>
    %144 = arith.negf %143 : vector<1x384xf32>
    %145 = math.exp %144 : vector<1x384xf32>
    %cst_32 = arith.constant 1.000000e+00 : f32
    %146 = vector.broadcast %cst_32 : f32 to vector<1x384xf32>
    %147 = arith.addf %146, %145 : vector<1x384xf32>
    %148 = arith.divf %146, %147 : vector<1x384xf32>
    %149 = vector.extract_strided_slice %142 {offsets = [0, 384], sizes = [1, 128], strides = [1, 1]} : vector<1x512xf32> to vector<1x128xf32>
    %150 = math.tanh %149 : vector<1x128xf32>
    %151 = vector.extract_strided_slice %148 {offsets = [0, 0], sizes = [1, 128], strides = [1, 1]} : vector<1x384xf32> to vector<1x128xf32>
    %152 = vector.extract_strided_slice %148 {offsets = [0, 128], sizes = [1, 128], strides = [1, 1]} : vector<1x384xf32> to vector<1x128xf32>
    %153 = vector.extract_strided_slice %148 {offsets = [0, 256], sizes = [1, 128], strides = [1, 1]} : vector<1x384xf32> to vector<1x128xf32>
    %154 = arith.mulf %152, %135 : vector<1x128xf32>
    %155 = arith.mulf %151, %150 : vector<1x128xf32>
    %156 = arith.addf %154, %155 : vector<1x128xf32>
    %157 = math.tanh %156 : vector<1x128xf32>
    %158 = arith.mulf %153, %157 : vector<1x128xf32>
    %159 = vector.extract_strided_slice %11 {offsets = [7, 0], sizes = [1, 512], strides = [1, 1]} : vector<12x512xf32> to vector<1x512xf32>
    %160 = arith.truncf %158 : vector<1x128xf32> to vector<1x128xbf16>
    %c0_33 = arith.constant 0 : index
    %c0_34 = arith.constant 0 : index
    %161 = vector.load %arg2[%c0_33, %c0_34] : memref<128x512xbf16, #tpu.memory_space<vmem>>, vector<128x512xbf16>
    %cst_35 = arith.constant dense<0.000000e+00> : vector<1x512xf32>
    %162 = tpu.matmul %160, %161, %cst_35 {dimension_numbers = #tpu.dot_dimension_numbers<[1], [0], [0], [1], [0, 0, 1, 1], [], []>} : vector<1x128xbf16>, vector<128x512xbf16>, vector<1x512xf32> -> vector<1x512xf32>
    %163 = arith.addf %159, %162 : vector<1x512xf32>
    %164 = vector.extract_strided_slice %163 {offsets = [0, 0], sizes = [1, 384], strides = [1, 1]} : vector<1x512xf32> to vector<1x384xf32>
    %165 = arith.negf %164 : vector<1x384xf32>
    %166 = math.exp %165 : vector<1x384xf32>
    %cst_36 = arith.constant 1.000000e+00 : f32
    %167 = vector.broadcast %cst_36 : f32 to vector<1x384xf32>
    %168 = arith.addf %167, %166 : vector<1x384xf32>
    %169 = arith.divf %167, %168 : vector<1x384xf32>
    %170 = vector.extract_strided_slice %163 {offsets = [0, 384], sizes = [1, 128], strides = [1, 1]} : vector<1x512xf32> to vector<1x128xf32>
    %171 = math.tanh %170 : vector<1x128xf32>
    %172 = vector.extract_strided_slice %169 {offsets = [0, 0], sizes = [1, 128], strides = [1, 1]} : vector<1x384xf32> to vector<1x128xf32>
    %173 = vector.extract_strided_slice %169 {offsets = [0, 128], sizes = [1, 128], strides = [1, 1]} : vector<1x384xf32> to vector<1x128xf32>
    %174 = vector.extract_strided_slice %169 {offsets = [0, 256], sizes = [1, 128], strides = [1, 1]} : vector<1x384xf32> to vector<1x128xf32>
    %175 = arith.mulf %173, %156 : vector<1x128xf32>
    %176 = arith.mulf %172, %171 : vector<1x128xf32>
    %177 = arith.addf %175, %176 : vector<1x128xf32>
    %178 = math.tanh %177 : vector<1x128xf32>
    %179 = arith.mulf %174, %178 : vector<1x128xf32>
    %180 = vector.extract_strided_slice %11 {offsets = [8, 0], sizes = [1, 512], strides = [1, 1]} : vector<12x512xf32> to vector<1x512xf32>
    %181 = arith.truncf %179 : vector<1x128xf32> to vector<1x128xbf16>
    %c0_37 = arith.constant 0 : index
    %c0_38 = arith.constant 0 : index
    %182 = vector.load %arg2[%c0_37, %c0_38] : memref<128x512xbf16, #tpu.memory_space<vmem>>, vector<128x512xbf16>
    %cst_39 = arith.constant dense<0.000000e+00> : vector<1x512xf32>
    %183 = tpu.matmul %181, %182, %cst_39 {dimension_numbers = #tpu.dot_dimension_numbers<[1], [0], [0], [1], [0, 0, 1, 1], [], []>} : vector<1x128xbf16>, vector<128x512xbf16>, vector<1x512xf32> -> vector<1x512xf32>
    %184 = arith.addf %180, %183 : vector<1x512xf32>
    %185 = vector.extract_strided_slice %184 {offsets = [0, 0], sizes = [1, 384], strides = [1, 1]} : vector<1x512xf32> to vector<1x384xf32>
    %186 = arith.negf %185 : vector<1x384xf32>
    %187 = math.exp %186 : vector<1x384xf32>
    %cst_40 = arith.constant 1.000000e+00 : f32
    %188 = vector.broadcast %cst_40 : f32 to vector<1x384xf32>
    %189 = arith.addf %188, %187 : vector<1x384xf32>
    %190 = arith.divf %188, %189 : vector<1x384xf32>
    %191 = vector.extract_strided_slice %184 {offsets = [0, 384], sizes = [1, 128], strides = [1, 1]} : vector<1x512xf32> to vector<1x128xf32>
    %192 = math.tanh %191 : vector<1x128xf32>
    %193 = vector.extract_strided_slice %190 {offsets = [0, 0], sizes = [1, 128], strides = [1, 1]} : vector<1x384xf32> to vector<1x128xf32>
    %194 = vector.extract_strided_slice %190 {offsets = [0, 128], sizes = [1, 128], strides = [1, 1]} : vector<1x384xf32> to vector<1x128xf32>
    %195 = vector.extract_strided_slice %190 {offsets = [0, 256], sizes = [1, 128], strides = [1, 1]} : vector<1x384xf32> to vector<1x128xf32>
    %196 = arith.mulf %194, %177 : vector<1x128xf32>
    %197 = arith.mulf %193, %192 : vector<1x128xf32>
    %198 = arith.addf %196, %197 : vector<1x128xf32>
    %199 = math.tanh %198 : vector<1x128xf32>
    %200 = arith.mulf %195, %199 : vector<1x128xf32>
    %201 = vector.extract_strided_slice %11 {offsets = [9, 0], sizes = [1, 512], strides = [1, 1]} : vector<12x512xf32> to vector<1x512xf32>
    %202 = arith.truncf %200 : vector<1x128xf32> to vector<1x128xbf16>
    %c0_41 = arith.constant 0 : index
    %c0_42 = arith.constant 0 : index
    %203 = vector.load %arg2[%c0_41, %c0_42] : memref<128x512xbf16, #tpu.memory_space<vmem>>, vector<128x512xbf16>
    %cst_43 = arith.constant dense<0.000000e+00> : vector<1x512xf32>
    %204 = tpu.matmul %202, %203, %cst_43 {dimension_numbers = #tpu.dot_dimension_numbers<[1], [0], [0], [1], [0, 0, 1, 1], [], []>} : vector<1x128xbf16>, vector<128x512xbf16>, vector<1x512xf32> -> vector<1x512xf32>
    %205 = arith.addf %201, %204 : vector<1x512xf32>
    %206 = vector.extract_strided_slice %205 {offsets = [0, 0], sizes = [1, 384], strides = [1, 1]} : vector<1x512xf32> to vector<1x384xf32>
    %207 = arith.negf %206 : vector<1x384xf32>
    %208 = math.exp %207 : vector<1x384xf32>
    %cst_44 = arith.constant 1.000000e+00 : f32
    %209 = vector.broadcast %cst_44 : f32 to vector<1x384xf32>
    %210 = arith.addf %209, %208 : vector<1x384xf32>
    %211 = arith.divf %209, %210 : vector<1x384xf32>
    %212 = vector.extract_strided_slice %205 {offsets = [0, 384], sizes = [1, 128], strides = [1, 1]} : vector<1x512xf32> to vector<1x128xf32>
    %213 = math.tanh %212 : vector<1x128xf32>
    %214 = vector.extract_strided_slice %211 {offsets = [0, 0], sizes = [1, 128], strides = [1, 1]} : vector<1x384xf32> to vector<1x128xf32>
    %215 = vector.extract_strided_slice %211 {offsets = [0, 128], sizes = [1, 128], strides = [1, 1]} : vector<1x384xf32> to vector<1x128xf32>
    %216 = vector.extract_strided_slice %211 {offsets = [0, 256], sizes = [1, 128], strides = [1, 1]} : vector<1x384xf32> to vector<1x128xf32>
    %217 = arith.mulf %215, %198 : vector<1x128xf32>
    %218 = arith.mulf %214, %213 : vector<1x128xf32>
    %219 = arith.addf %217, %218 : vector<1x128xf32>
    %220 = math.tanh %219 : vector<1x128xf32>
    %221 = arith.mulf %216, %220 : vector<1x128xf32>
    %222 = vector.extract_strided_slice %11 {offsets = [10, 0], sizes = [1, 512], strides = [1, 1]} : vector<12x512xf32> to vector<1x512xf32>
    %223 = arith.truncf %221 : vector<1x128xf32> to vector<1x128xbf16>
    %c0_45 = arith.constant 0 : index
    %c0_46 = arith.constant 0 : index
    %224 = vector.load %arg2[%c0_45, %c0_46] : memref<128x512xbf16, #tpu.memory_space<vmem>>, vector<128x512xbf16>
    %cst_47 = arith.constant dense<0.000000e+00> : vector<1x512xf32>
    %225 = tpu.matmul %223, %224, %cst_47 {dimension_numbers = #tpu.dot_dimension_numbers<[1], [0], [0], [1], [0, 0, 1, 1], [], []>} : vector<1x128xbf16>, vector<128x512xbf16>, vector<1x512xf32> -> vector<1x512xf32>
    %226 = arith.addf %222, %225 : vector<1x512xf32>
    %227 = vector.extract_strided_slice %226 {offsets = [0, 0], sizes = [1, 384], strides = [1, 1]} : vector<1x512xf32> to vector<1x384xf32>
    %228 = arith.negf %227 : vector<1x384xf32>
    %229 = math.exp %228 : vector<1x384xf32>
    %cst_48 = arith.constant 1.000000e+00 : f32
    %230 = vector.broadcast %cst_48 : f32 to vector<1x384xf32>
    %231 = arith.addf %230, %229 : vector<1x384xf32>
    %232 = arith.divf %230, %231 : vector<1x384xf32>
    %233 = vector.extract_strided_slice %226 {offsets = [0, 384], sizes = [1, 128], strides = [1, 1]} : vector<1x512xf32> to vector<1x128xf32>
    %234 = math.tanh %233 : vector<1x128xf32>
    %235 = vector.extract_strided_slice %232 {offsets = [0, 0], sizes = [1, 128], strides = [1, 1]} : vector<1x384xf32> to vector<1x128xf32>
    %236 = vector.extract_strided_slice %232 {offsets = [0, 128], sizes = [1, 128], strides = [1, 1]} : vector<1x384xf32> to vector<1x128xf32>
    %237 = vector.extract_strided_slice %232 {offsets = [0, 256], sizes = [1, 128], strides = [1, 1]} : vector<1x384xf32> to vector<1x128xf32>
    %238 = arith.mulf %236, %219 : vector<1x128xf32>
    %239 = arith.mulf %235, %234 : vector<1x128xf32>
    %240 = arith.addf %238, %239 : vector<1x128xf32>
    %241 = math.tanh %240 : vector<1x128xf32>
    %242 = arith.mulf %237, %241 : vector<1x128xf32>
    %243 = vector.extract_strided_slice %11 {offsets = [11, 0], sizes = [1, 512], strides = [1, 1]} : vector<12x512xf32> to vector<1x512xf32>
    %244 = arith.truncf %242 : vector<1x128xf32> to vector<1x128xbf16>
    %c0_49 = arith.constant 0 : index
    %c0_50 = arith.constant 0 : index
    %245 = vector.load %arg2[%c0_49, %c0_50] : memref<128x512xbf16, #tpu.memory_space<vmem>>, vector<128x512xbf16>
    %cst_51 = arith.constant dense<0.000000e+00> : vector<1x512xf32>
    %246 = tpu.matmul %244, %245, %cst_51 {dimension_numbers = #tpu.dot_dimension_numbers<[1], [0], [0], [1], [0, 0, 1, 1], [], []>} : vector<1x128xbf16>, vector<128x512xbf16>, vector<1x512xf32> -> vector<1x512xf32>
    %247 = arith.addf %243, %246 : vector<1x512xf32>
    %248 = vector.extract_strided_slice %247 {offsets = [0, 0], sizes = [1, 384], strides = [1, 1]} : vector<1x512xf32> to vector<1x384xf32>
    %249 = arith.negf %248 : vector<1x384xf32>
    %250 = math.exp %249 : vector<1x384xf32>
    %cst_52 = arith.constant 1.000000e+00 : f32
    %251 = vector.broadcast %cst_52 : f32 to vector<1x384xf32>
    %252 = arith.addf %251, %250 : vector<1x384xf32>
    %253 = arith.divf %251, %252 : vector<1x384xf32>
    %254 = vector.extract_strided_slice %247 {offsets = [0, 384], sizes = [1, 128], strides = [1, 1]} : vector<1x512xf32> to vector<1x128xf32>
    %255 = math.tanh %254 : vector<1x128xf32>
    %256 = vector.extract_strided_slice %253 {offsets = [0, 0], sizes = [1, 128], strides = [1, 1]} : vector<1x384xf32> to vector<1x128xf32>
    %257 = vector.extract_strided_slice %253 {offsets = [0, 128], sizes = [1, 128], strides = [1, 1]} : vector<1x384xf32> to vector<1x128xf32>
    %258 = vector.extract_strided_slice %253 {offsets = [0, 256], sizes = [1, 128], strides = [1, 1]} : vector<1x384xf32> to vector<1x128xf32>
    %259 = arith.mulf %257, %240 : vector<1x128xf32>
    %260 = arith.mulf %256, %255 : vector<1x128xf32>
    %261 = arith.addf %259, %260 : vector<1x128xf32>
    %262 = math.tanh %261 : vector<1x128xf32>
    %263 = arith.mulf %258, %262 : vector<1x128xf32>
    %c0_53 = arith.constant 0 : index
    %c0_54 = arith.constant 0 : index
    %264 = vector.load %arg3[%c0_53, %c0_54] : memref<256x128xbf16, #tpu.memory_space<vmem>>, vector<128x128xbf16>
    %c128 = arith.constant 128 : index
    %c0_55 = arith.constant 0 : index
    %265 = vector.load %arg3[%c128, %c0_55] : memref<256x128xbf16, #tpu.memory_space<vmem>>, vector<128x128xbf16>
    %266 = arith.truncf %263 : vector<1x128xf32> to vector<1x128xbf16>
    %cst_56 = arith.constant dense<0.000000e+00> : vector<1x128xf32>
    %267 = tpu.matmul %266, %264, %cst_56 {dimension_numbers = #tpu.dot_dimension_numbers<[1], [0], [0], [1], [0, 0, 1, 1], [], []>} : vector<1x128xbf16>, vector<128x128xbf16>, vector<1x128xf32> -> vector<1x128xf32>
    %268 = arith.addf %267, %4 : vector<1x128xf32>
    %cst_57 = arith.constant 0.000000e+00 : f32
    %269 = vector.broadcast %cst_57 : f32 to vector<1x128xf32>
    %270 = arith.maximumf %268, %269 : vector<1x128xf32>
    %271 = arith.truncf %270 : vector<1x128xf32> to vector<1x128xbf16>
    %cst_58 = arith.constant dense<0.000000e+00> : vector<1x128xf32>
    %272 = tpu.matmul %271, %265, %cst_58 {dimension_numbers = #tpu.dot_dimension_numbers<[1], [0], [0], [1], [0, 0, 1, 1], [], []>} : vector<1x128xbf16>, vector<128x128xbf16>, vector<1x128xf32> -> vector<1x128xf32>
    %273 = arith.addf %272, %5 : vector<1x128xf32>
    %274 = vector.extract_strided_slice %273 {offsets = [0, 0], sizes = [1, 4], strides = [1, 1]} : vector<1x128xf32> to vector<1x4xf32>
    %c0_59 = arith.constant 0 : index
    %c0_60 = arith.constant 0 : index
    %275 = vector.load %arg5[%c0_59, %c0_60] : memref<1x4xf32, #tpu.memory_space<vmem>>, vector<1x4xf32>
    tpu.vector_store %arg5[%c0_59, %c0_60], %274 {strides = array<i32>} : memref<1x4xf32, #tpu.memory_space<vmem>>, vector<1x4xf32>,
    return
  }
}

</mosaic_0001>

<llo_original>
// kernel: lstm_xml_forward.1
$region0: #{lstm_xml_forward.1}
  #allocation0 [shape = 'u32[]', space=smem, size = 0x4, offset = 0x4, fixed_abs, tag = 'smem constant byte address 0x4 - core index']
  #allocation1 [shape = 'u32[144,128]{1,0:T(1,128)}', space=vmem, size = 0x12000, scoped, tag = 'internal scratch']
  %s0 = inlined_call_operand.vmem [shape: f32[12,32], index: 0, kind: input, shape index: {}]
  %s1 = inlined_call_operand.hbm [shape: bf16[32,512], index: 1, kind: input, shape index: {}]
  %s2 = inlined_call_operand.vmem [shape: bf16[128,512], index: 2, kind: input, shape index: {}]
  %s3 = inlined_call_operand.hbm [shape: bf16[256,128], index: 3, kind: input, shape index: {}]
  %s4 = inlined_call_operand.vmem [shape: f32[2,512], index: 4, kind: input, shape index: {}]
  %s5 = inlined_call_operand.hbm [shape: f32[1,4], index: 5, kind: output, shape index: {}]
  %s6 = sld [smem:[#allocation0]]
  $region38: #{lstm_xml_forward.1} parent=0
    _
  %s8 = ssub.s32 1, %s6
  %s9 = scalar_select 0, %s8, %s6
  $region1: #{lstm_xml_forward.1} parent=0
    #allocation2 [shape = 'u8[32768]{0}', space=vmem, size = 0x8000, scoped, tag = 'input window, operand 1, single buffered']
    #allocation3 [shape = 's32[1]{0}', space=sflag, size = 0x4, scoped, tag = 'scoped memory for lstm_xml_forward.1']
    #allocation4 [shape = 's32[1]{0}', space=sflag, size = 0x4, scoped, tag = 'scoped memory for lstm_xml_forward.1']
    #allocation5 [shape = 'u8[65536]{0}', space=vmem, size = 0x10000, scoped, tag = 'input window, operand 3, single buffered']
    #allocation6 [shape = 's32[1]{0}', space=sflag, size = 0x4, scoped, tag = 'scoped memory for lstm_xml_forward.1']
    #allocation7 [shape = 'u8[512]{0}', space=vmem, size = 0x400, scoped, tag = 'output window, operand 0, single buffered']
    %10 = vsyncpa [#allocation3], 0
    %11 = vsyncpa [#allocation6], 0
    %12 = vsyncpa [#allocation4], 0
    // Predicated region
    $region2: #{lstm_xml_forward.1} parent=1 // pred_check
      _
    $region3: #{lstm_xml_forward.1} parent=1 // pred_check_branch
      %14 = sbr.rel (0) target = $region5
    $region4: #{lstm_xml_forward.1} parent=1 // pred_region
      _
    $region5: #{lstm_xml_forward.1} parent=1 // pred_fallthru
      _
    // Predicated region
    $region6: #{lstm_xml_forward.1} parent=1 // pred_check
      _
    $region7: #{lstm_xml_forward.1} parent=1 // pred_check_branch
      %16 = sbr.rel (0) target = $region9
    $region8: #{lstm_xml_forward.1} parent=1 // pred_region
      %s18 = ssub.s32 1024, 1024
      %19 = vsyncadd [#allocation3], %s18
      %s20 = sshll.u32 [#allocation2], 4
      %s21 = int_to_ptr.vmem [resolvable:$true] %s20
      %26 = dma.hbm_to_vmem [thread:$0]  %s1, 1024, %s21, [#allocation3], 256, 256, 16
    $region9: #{lstm_xml_forward.1} parent=1 // pred_fallthru
      _
    // Predicated region
    $region10: #{lstm_xml_forward.1} parent=1 // pred_check
      _
    $region11: #{lstm_xml_forward.1} parent=1 // pred_check_branch
      %28 = sbr.rel (0) target = $region13
    $region12: #{lstm_xml_forward.1} parent=1 // pred_region
      _
    $region13: #{lstm_xml_forward.1} parent=1 // pred_fallthru
      _
    // Predicated region
    $region14: #{lstm_xml_forward.1} parent=1 // pred_check
      _
    $region15: #{lstm_xml_forward.1} parent=1 // pred_check_branch
      %30 = sbr.rel (0) target = $region17
    $region16: #{lstm_xml_forward.1} parent=1 // pred_region
      %s32 = ssub.s32 2048, 2048
      %33 = vsyncadd [#allocation6], %s32
      %s34 = sshll.u32 [#allocation5], 4
      %s35 = int_to_ptr.vmem [resolvable:$true] %s34
      %40 = dma.hbm_to_vmem [thread:$0]  %s3, 2048, %s35, [#allocation6], 64, 64, 4
    $region17: #{lstm_xml_forward.1} parent=1 // pred_fallthru
      _
    // Predicated region
    $region18: #{lstm_xml_forward.1} parent=1 // pred_check
      _
    $region19: #{lstm_xml_forward.1} parent=1 // pred_check_branch
      %42 = sbr.rel (0) target = $region21
    $region20: #{lstm_xml_forward.1} parent=1 // pred_region
      _
    $region21: #{lstm_xml_forward.1} parent=1 // pred_fallthru
      _
    // Predicated region
    $region22: #{lstm_xml_forward.1} parent=1 // pred_check
      _
    $region23: #{lstm_xml_forward.1} parent=1 // pred_check_branch
      %44 = sbr.rel (0) target = $region25
    $region24: #{lstm_xml_forward.1} parent=1 // pred_region
      %45 = dma.done [#allocation3], 1024
    $region25: #{lstm_xml_forward.1} parent=1 // pred_fallthru
      _
    // Predicated region
    $region26: #{lstm_xml_forward.1} parent=1 // pred_check
      _
    $region27: #{lstm_xml_forward.1} parent=1 // pred_check_branch
      %47 = sbr.rel (0) target = $region29
    $region28: #{lstm_xml_forward.1} parent=1 // pred_region
      %48 = dma.done [#allocation6], 2048
    $region29: #{lstm_xml_forward.1} parent=1 // pred_fallthru
      _
    %v50 = vld [vmem:[%s4] sm:$0xff]
    %v51 = vld [vmem:[%s0] sm:$0xff]
    %v52 = vld [vmem:[%s0 + $0x8] sm:$0xf]
    %v53 = vpack.c.bf16 %v52, %v51
    %v54 = vld [vmem:[#allocation2] sm:$0xff]
    %v55 = vld [vmem:[#allocation2 + $0x8] sm:$0xff]
    %v56 = vld [vmem:[#allocation2 + $0x10] sm:$0xff]
    %v57 = vld [vmem:[#allocation2 + $0x18] sm:$0xff]
    %v58 = vld [vmem:[#allocation2 + $0x20] sm:$0xff]
    %v59 = vld [vmem:[#allocation2 + $0x28] sm:$0xff]
    %v60 = vld [vmem:[#allocation2 + $0x30] sm:$0xff]
    %v61 = vld [vmem:[#allocation2 + $0x38] sm:$0xff]
    %v63 = vlaneseq
    %v64 = vshrl.u32 %v63, 7
    %v65 = vsub.s32 0, %v64
    %v66 = vrot.slane %v50, %v65
    %v67 = vlaneseq
    %v68 = vshrl.u32 %v67, 7
    %v69 = vsub.s32 2, %v68
    %v70 = vrot.slane %v50, %v69
    %v71 = vlaneseq
    %v72 = vshrl.u32 %v71, 7
    %v73 = vsub.s32 4, %v72
    %v74 = vrot.slane %v50, %v73
    %v75 = vlaneseq
    %v76 = vshrl.u32 %v75, 7
    %v77 = vsub.s32 6, %v76
    %v78 = vrot.slane %v50, %v77
    %v83 = vlaneseq
    %v84 = vshrl.u32 %v83, 7
    %v85 = vsub.s32 0, %v84
    %v86 = vrot.slane %v66, %v85
    %v87 = vlaneseq
    %v88 = vshrl.u32 %v87, 7
    %v89 = vsub.s32 0, %v88
    %v90 = vrot.slane %v70, %v89
    %v91 = vlaneseq
    %v92 = vshrl.u32 %v91, 7
    %v93 = vsub.s32 0, %v92
    %v94 = vrot.slane %v74, %v93
    %v95 = vlaneseq
    %v96 = vshrl.u32 %v95, 7
    %v97 = vsub.s32 0, %v96
    %v98 = vrot.slane %v78, %v97
    %v107 = vunpack.c.l.b16 %v54
    %v108 = vunpack.c.h.b16 %v54
    %v109 = vunpack.c.l.b16 %v55
    %v110 = vunpack.c.h.b16 %v55
    %v111 = vunpack.c.l.b16 %v56
    %v112 = vunpack.c.h.b16 %v56
    %v113 = vunpack.c.l.b16 %v57
    %v114 = vunpack.c.h.b16 %v57
    %v115 = vunpack.c.l.b16 %v58
    %v116 = vunpack.c.h.b16 %v58
    %v117 = vunpack.c.l.b16 %v59
    %v118 = vunpack.c.h.b16 %v59
    %v119 = vunpack.c.l.b16 %v60
    %v120 = vunpack.c.h.b16 %v60
    %v121 = vunpack.c.l.b16 %v61
    %v122 = vunpack.c.h.b16 %v61
    %v123 = vpack.c.b16 %v111, %v107
    %v124 = vpack.c.b16 %v112, %v108
    %v125 = vpack.c.b16 %v113, %v109
    %v126 = vpack.c.b16 %v114, %v110
    %v127 = vpack.c.b16 %v119, %v115
    %v128 = vpack.c.b16 %v120, %v116
    %v129 = vpack.c.b16 %v121, %v117
    %v130 = vpack.c.b16 %v122, %v118
    %vm139 = vcmask 261120
    %v141 = vsel %vm139, %v53, 0
    %143 = vmatprep.subr.bf16.mxu0 %v124
    %144 = vmatpush1.bf16.msra.mxu0 %v123
    %145 = vmatprep.subr.bf16.mxu0 %v128
    %146 = vmatpush1.bf16.msra.mxu0 %v127
    %147 = vmatprep.subr.bf16.mxu0 0
    %148 = vmatpush1.bf16.msra.mxu0 0
    %149 = vmatprep.subr.bf16.mxu0 0
    %150 = vmatpush1.bf16.msra.mxu0 0
    %151 = vmatprep.subr.bf16.mxu0 0
    %152 = vmatpush1.bf16.msra.mxu0 0
    %153 = vmatprep.subr.bf16.mxu0 0
    %154 = vmatpush1.bf16.msra.mxu0 0
    %155 = vmatprep.subr.bf16.mxu0 0
    %156 = vmatpush1.bf16.msra.mxu0 0
    %157 = vmatprep.subr.bf16.mxu0 0
    %158 = vmatpush1.bf16.msra.mxu0 0
    %159 = vmatprep.subr.bf16.mxu0 0
    %160 = vmatpush1.bf16.msra.mxu0 0
    %161 = vmatprep.subr.bf16.mxu0 0
    %162 = vmatpush1.bf16.msra.mxu0 0
    %163 = vmatprep.subr.bf16.mxu0 0
    %164 = vmatpush1.bf16.msra.mxu0 0
    %165 = vmatprep.subr.bf16.mxu0 0
    %166 = vmatpush1.bf16.msra.mxu0 0
    %167 = vmatprep.subr.bf16.mxu0 0
    %168 = vmatpush1.bf16.msra.mxu0 0
    %169 = vmatprep.subr.bf16.mxu0 0
    %170 = vmatpush1.bf16.msra.mxu0 0
    %171 = vmatprep.subr.bf16.mxu0 0
    %172 = vmatpush1.bf16.msra.mxu0 0
    %173 = vmatprep.subr.bf16.mxu0 0
    %174 = vmatpush1.bf16.msra.mxu0 0
    %175 = vmatprep.mubr.bf16.mxu0 0
    %176 = vmatmul.mubr.bf16.gmra.mrb[0].mxu0 %v141
    %v177 = vpop.f32.mrb[0].mxu0
    %v178 = vadd.f32 %v86, %v177
    %v179 = vpop.f32.mrb[0].mxu0
    %v180 = vadd.f32 %v90, %v179
    %v181 = vpop.f32.mrb[0].mxu0
    %v182 = vadd.f32 %v86, %v181
    %v183 = vpop.f32.mrb[0].mxu0
    %v184 = vadd.f32 %v90, %v183
    %185 = vdwg.mxu0
    %186 = vmatprep.subr.bf16.mxu0 %v126
    %187 = vmatpush1.bf16.msra.mxu0 %v125
    %188 = vmatprep.subr.bf16.mxu0 %v130
    %189 = vmatpush1.bf16.msra.mxu0 %v129
    %190 = vmatprep.subr.bf16.mxu0 0
    %191 = vmatpush1.bf16.msra.mxu0 0
    %192 = vmatprep.subr.bf16.mxu0 0
    %193 = vmatpush1.bf16.msra.mxu0 0
    %194 = vmatprep.subr.bf16.mxu0 0
    %195 = vmatpush1.bf16.msra.mxu0 0
    %196 = vmatprep.subr.bf16.mxu0 0
    %197 = vmatpush1.bf16.msra.mxu0 0
    %198 = vmatprep.subr.bf16.mxu0 0
    %199 = vmatpush1.bf16.msra.mxu0 0
    %200 = vmatprep.subr.bf16.mxu0 0
    %201 = vmatpush1.bf16.msra.mxu0 0
    %202 = vmatprep.subr.bf16.mxu0 0
    %203 = vmatpush1.bf16.msra.mxu0 0
    %204 = vmatprep.subr.bf16.mxu0 0
    %205 = vmatpush1.bf16.msra.mxu0 0
    %206 = vmatprep.subr.bf16.mxu0 0
    %207 = vmatpush1.bf16.msra.mxu0 0
    %208 = vmatprep.subr.bf16.mxu0 0
    %209 = vmatpush1.bf16.msra.mxu0 0
    %210 = vmatprep.subr.bf16.mxu0 0
    %211 = vmatpush1.bf16.msra.mxu0 0
    %212 = vmatprep.subr.bf16.mxu0 0
    %213 = vmatpush1.bf16.msra.mxu0 0
    %214 = vmatprep.subr.bf16.mxu0 0
    %215 = vmatpush1.bf16.msra.mxu0 0
    %216 = vmatprep.subr.bf16.mxu0 0
    %217 = vmatpush1.bf16.msra.mxu0 0
    %218 = vmatprep.mubr.bf16.mxu0 0
    %219 = vmatmul.mubr.bf16.gmra.mrb[0].mxu0 %v141
    %v220 = vpop.f32.mrb[0].mxu0
    %v221 = vadd.f32 %v94, %v220
    %v222 = vpop.f32.mrb[0].mxu0
    %v223 = vadd.f32 %v98, %v222
    %v224 = vpop.f32.mrb[0].mxu0
    %v225 = vadd.f32 %v94, %v224
    %v226 = vpop.f32.mrb[0].mxu0
    %v227 = vadd.f32 %v98, %v226
    %228 = vdwg.mxu0
    %v229 = vpack.c.bf16 %v50, %v50
    %v230 = vld [vmem:[%s2] sm:$0xff]
    %v231 = vld [vmem:[%s2 + $0x8] sm:$0xff]
    %v232 = vld [vmem:[%s2 + $0x10] sm:$0xff]
    %v233 = vld [vmem:[%s2 + $0x18] sm:$0xff]
    %v234 = vld [vmem:[%s2 + $0x20] sm:$0xff]
    %v235 = vld [vmem:[%s2 + $0x28] sm:$0xff]
    %v236 = vld [vmem:[%s2 + $0x30] sm:$0xff]
    %v237 = vld [vmem:[%s2 + $0x38] sm:$0xff]
    %v238 = vld [vmem:[%s2 + $0x40] sm:$0xff]
    %v239 = vld [vmem:[%s2 + $0x48] sm:$0xff]
    %v240 = vld [vmem:[%s2 + $0x50] sm:$0xff]
    %v241 = vld [vmem:[%s2 + $0x58] sm:$0xff]
    %v242 = vld [vmem:[%s2 + $0x60] sm:$0xff]
    %v243 = vld [vmem:[%s2 + $0x68] sm:$0xff]
    %v244 = vld [vmem:[%s2 + $0x70] sm:$0xff]
    %v245 = vld [vmem:[%s2 + $0x78] sm:$0xff]
    %v246 = vld [vmem:[%s2 + $0x80] sm:$0xff]
    %v247 = vld [vmem:[%s2 + $0x88] sm:$0xff]
    %v248 = vld [vmem:[%s2 + $0x90] sm:$0xff]
    %v249 = vld [vmem:[%s2 + $0x98] sm:$0xff]
    %v250 = vld [vmem:[%s2 + $0xa0] sm:$0xff]
    %v251 = vld [vmem:[%s2 + $0xa8] sm:$0xff]
    %v252 = vld [vmem:[%s2 + $0xb0] sm:$0xff]
    %v253 = vld [vmem:[%s2 + $0xb8] sm:$0xff]
    %v254 = vld [vmem:[%s2 + $0xc0] sm:$0xff]
    %v255 = vld [vmem:[%s2 + $0xc8] sm:$0xff]
    %v256 = vld [vmem:[%s2 + $0xd0] sm:$0xff]
    %v257 = vld [vmem:[%s2 + $0xd8] sm:$0xff]
    %v258 = vld [vmem:[%s2 + $0xe0] sm:$0xff]
    %v259 = vld [vmem:[%s2 + $0xe8] sm:$0xff]
    %v260 = vld [vmem:[%s2 + $0xf0] sm:$0xff]
    %v261 = vld [vmem:[%s2 + $0xf8] sm:$0xff]
    %v263 = vshrl.u32 %v229, 16
    %v298 = vunpack.c.l.b16 %v230
    %v299 = vunpack.c.h.b16 %v230
    %v300 = vunpack.c.l.b16 %v231
    %v301 = vunpack.c.h.b16 %v231
    %v302 = vunpack.c.l.b16 %v232
    %v303 = vunpack.c.h.b16 %v232
    %v304 = vunpack.c.l.b16 %v233
    %v305 = vunpack.c.h.b16 %v233
    %v306 = vunpack.c.l.b16 %v234
    %v307 = vunpack.c.h.b16 %v234
    %v308 = vunpack.c.l.b16 %v235
    %v309 = vunpack.c.h.b16 %v235
    %v310 = vunpack.c.l.b16 %v236
    %v311 = vunpack.c.h.b16 %v236
    %v312 = vunpack.c.l.b16 %v237
    %v313 = vunpack.c.h.b16 %v237
    %v314 = vunpack.c.l.b16 %v238
    %v315 = vunpack.c.h.b16 %v238
    %v316 = vunpack.c.l.b16 %v239
    %v317 = vunpack.c.h.b16 %v239
    %v318 = vunpack.c.l.b16 %v240
    %v319 = vunpack.c.h.b16 %v240
    %v320 = vunpack.c.l.b16 %v241
    %v321 = vunpack.c.h.b16 %v241
    %v322 = vunpack.c.l.b16 %v242
    %v323 = vunpack.c.h.b16 %v242
    %v324 = vunpack.c.l.b16 %v243
    %v325 = vunpack.c.h.b16 %v243
    %v326 = vunpack.c.l.b16 %v244
    %v327 = vunpack.c.h.b16 %v244
    %v328 = vunpack.c.l.b16 %v245
    %v329 = vunpack.c.h.b16 %v245
    %v330 = vunpack.c.l.b16 %v246
    %v331 = vunpack.c.h.b16 %v246
    %v332 = vunpack.c.l.b16 %v247
    %v333 = vunpack.c.h.b16 %v247
    %v334 = vunpack.c.l.b16 %v248
    %v335 = vunpack.c.h.b16 %v248
    %v336 = vunpack.c.l.b16 %v249
    %v337 = vunpack.c.h.b16 %v249
    %v338 = vunpack.c.l.b16 %v250
    %v339 = vunpack.c.h.b16 %v250
    %v340 = vunpack.c.l.b16 %v251
    %v341 = vunpack.c.h.b16 %v251
    %v342 = vunpack.c.l.b16 %v252
    %v343 = vunpack.c.h.b16 %v252
    %v344 = vunpack.c.l.b16 %v253
    %v345 = vunpack.c.h.b16 %v253
    %v346 = vunpack.c.l.b16 %v254
    %v347 = vunpack.c.h.b16 %v254
    %v348 = vunpack.c.l.b16 %v255
    %v349 = vunpack.c.h.b16 %v255
    %v350 = vunpack.c.l.b16 %v256
    %v351 = vunpack.c.h.b16 %v256
    %v352 = vunpack.c.l.b16 %v257
    %v353 = vunpack.c.h.b16 %v257
    %v354 = vunpack.c.l.b16 %v258
    %v355 = vunpack.c.h.b16 %v258
    %v356 = vunpack.c.l.b16 %v259
    %v357 = vunpack.c.h.b16 %v259
    %v358 = vunpack.c.l.b16 %v260
    %v359 = vunpack.c.h.b16 %v260
    %v360 = vunpack.c.l.b16 %v261
    %v361 = vunpack.c.h.b16 %v261
    %v362 = vpack.c.b16 %v302, %v298
    %v363 = vpack.c.b16 %v303, %v299
    %v364 = vpack.c.b16 %v304, %v300
    %v365 = vpack.c.b16 %v305, %v301
    %v366 = vpack.c.b16 %v310, %v306
    %v367 = vpack.c.b16 %v311, %v307
    %v368 = vpack.c.b16 %v312, %v308
    %v369 = vpack.c.b16 %v313, %v309
    %v370 = vpack.c.b16 %v318, %v314
    %v371 = vpack.c.b16 %v319, %v315
    %v372 = vpack.c.b16 %v320, %v316
    %v373 = vpack.c.b16 %v321, %v317
    %v374 = vpack.c.b16 %v326, %v322
    %v375 = vpack.c.b16 %v327, %v323
    %v376 = vpack.c.b16 %v328, %v324
    %v377 = vpack.c.b16 %v329, %v325
    %v378 = vpack.c.b16 %v334, %v330
    %v379 = vpack.c.b16 %v335, %v331
    %v380 = vpack.c.b16 %v336, %v332
    %v381 = vpack.c.b16 %v337, %v333
    %v382 = vpack.c.b16 %v342, %v338
    %v383 = vpack.c.b16 %v343, %v339
    %v384 = vpack.c.b16 %v344, %v340
    %v385 = vpack.c.b16 %v345, %v341
    %v386 = vpack.c.b16 %v350, %v346
    %v387 = vpack.c.b16 %v351, %v347
    %v388 = vpack.c.b16 %v352, %v348
    %v389 = vpack.c.b16 %v353, %v349
    %v390 = vpack.c.b16 %v358, %v354
    %v391 = vpack.c.b16 %v359, %v355
    %v392 = vpack.c.b16 %v360, %v356
    %v393 = vpack.c.b16 %v361, %v357
    %426 = vmatprep.subr.bf16.mxu0 %v363
    %427 = vmatpush1.bf16.msra.mxu0 %v362
    %428 = vmatprep.subr.bf16.mxu0 %v367
    %429 = vmatpush1.bf16.msra.mxu0 %v366
    %430 = vmatprep.subr.bf16.mxu0 %v371
    %431 = vmatpush1.bf16.msra.mxu0 %v370
    %432 = vmatprep.subr.bf16.mxu0 %v375
    %433 = vmatpush1.bf16.msra.mxu0 %v374
    %434 = vmatprep.subr.bf16.mxu0 %v379
    %435 = vmatpush1.bf16.msra.mxu0 %v378
    %436 = vmatprep.subr.bf16.mxu0 %v383
    %437 = vmatpush1.bf16.msra.mxu0 %v382
    %438 = vmatprep.subr.bf16.mxu0 %v387
    %439 = vmatpush1.bf16.msra.mxu0 %v386
    %440 = vmatprep.subr.bf16.mxu0 %v391
    %441 = vmatpush1.bf16.msra.mxu0 %v390
    %442 = vmatprep.subr.bf16.mxu0 0
    %443 = vmatpush1.bf16.msra.mxu0 0
    %444 = vmatprep.subr.bf16.mxu0 0
    %445 = vmatpush1.bf16.msra.mxu0 0
    %446 = vmatprep.subr.bf16.mxu0 0
    %447 = vmatpush1.bf16.msra.mxu0 0
    %448 = vmatprep.subr.bf16.mxu0 0
    %449 = vmatpush1.bf16.msra.mxu0 0
    %450 = vmatprep.subr.bf16.mxu0 0
    %451 = vmatpush1.bf16.msra.mxu0 0
    %452 = vmatprep.subr.bf16.mxu0 0
    %453 = vmatpush1.bf16.msra.mxu0 0
    %454 = vmatprep.subr.bf16.mxu0 0
    %455 = vmatpush1.bf16.msra.mxu0 0
    %456 = vmatprep.subr.bf16.mxu0 0
    %457 = vmatpush1.bf16.msra.mxu0 0
    %458 = vmatprep.mubr.bf16.mxu0 0
    %459 = vmatmul.mubr.bf16.gmra.mrb[0].mxu0 %v263
    %v460 = vpop.f32.mrb[0].mxu0
    %v461 = vadd.f32 0.0, %v460
    %v462 = vpop.f32.mrb[0].mxu0
    %v463 = vadd.f32 0.0, %v462
    %v464 = vpop.f32.mrb[0].mxu0
    %v465 = vpop.f32.mrb[0].mxu0
    %466 = vdwg.mxu0
    %467 = vmatprep.subr.bf16.mxu0 %v365
    %468 = vmatpush1.bf16.msra.mxu0 %v364
    %469 = vmatprep.subr.bf16.mxu0 %v369
    %470 = vmatpush1.bf16.msra.mxu0 %v368
    %471 = vmatprep.subr.bf16.mxu0 %v373
    %472 = vmatpush1.bf16.msra.mxu0 %v372
    %473 = vmatprep.subr.bf16.mxu0 %v377
    %474 = vmatpush1.bf16.msra.mxu0 %v376
    %475 = vmatprep.subr.bf16.mxu0 %v381
    %476 = vmatpush1.bf16.msra.mxu0 %v380
    %477 = vmatprep.subr.bf16.mxu0 %v385
    %478 = vmatpush1.bf16.msra.mxu0 %v384
    %479 = vmatprep.subr.bf16.mxu0 %v389
    %480 = vmatpush1.bf16.msra.mxu0 %v388
    %481 = vmatprep.subr.bf16.mxu0 %v393
    %482 = vmatpush1.bf16.msra.mxu0 %v392
    %483 = vmatprep.subr.bf16.mxu0 0
    %484 = vmatpush1.bf16.msra.mxu0 0
    %485 = vmatprep.subr.bf16.mxu0 0
    %486 = vmatpush1.bf16.msra.mxu0 0
    %487 = vmatprep.subr.bf16.mxu0 0
    %488 = vmatpush1.bf16.msra.mxu0 0
    %489 = vmatprep.subr.bf16.mxu0 0
    %490 = vmatpush1.bf16.msra.mxu0 0
    %491 = vmatprep.subr.bf16.mxu0 0
    %492 = vmatpush1.bf16.msra.mxu0 0
    %493 = vmatprep.subr.bf16.mxu0 0
    %494 = vmatpush1.bf16.msra.mxu0 0
    %495 = vmatprep.subr.bf16.mxu0 0
    %496 = vmatpush1.bf16.msra.mxu0 0
    %497 = vmatprep.subr.bf16.mxu0 0
    %498 = vmatpush1.bf16.msra.mxu0 0
    %499 = vmatprep.mubr.bf16.mxu0 0
    %500 = vmatmul.mubr.bf16.gmra.mrb[0].mxu0 %v263
    %v501 = vpop.f32.mrb[0].mxu0
    %v502 = vadd.f32 0.0, %v501
    %v503 = vpop.f32.mrb[0].mxu0
    %v504 = vadd.f32 0.0, %v503
    %v505 = vpop.f32.mrb[0].mxu0
    %v506 = vpop.f32.mrb[0].mxu0
    %507 = vdwg.mxu0
    %v508 = vadd.f32 %v178, %v461
    %v509 = vadd.f32 %v180, %v463
    %v510 = vadd.f32 %v221, %v502
    %v511 = vadd.f32 %v223, %v504
    %v512 = vxor.u32 %v508, 2147483648
    %v513 = vxor.u32 %v509, 2147483648
    %v514 = vxor.u32 %v510, 2147483648
    %v515 = vmul.f32 %v512, 1.442695
    %v516 = vpow.pop %v515
    %v517 = vmul.f32 %v513, 1.442695
    %v518 = vpow.pop %v517
    %v519 = vmul.f32 %v514, 1.442695
    %v520 = vpow.pop %v519
    %v521 = vadd.f32 %v516, 1.0
    %v522 = vadd.f32 %v518, 1.0
    %v523 = vadd.f32 %v520, 1.0
    %v524 = vrcp.pop %v521
    %v525 = vmul.f32 1.0, %v524
    %v526 = vrcp.pop %v522
    %v527 = vmul.f32 1.0, %v526
    %v528 = vrcp.pop %v523
    %v529 = vmul.f32 1.0, %v528
    %v530 = vtanh.pop %v511
    %v531 = vlaneseq
    %v532 = vshrl.u32 %v531, 7
    %v533 = vsub.s32 3, %v532
    %v534 = vrot.slane %v50, %v533
    %v536 = vmul.f32 %v527, %v534
    %v537 = vmul.f32 %v525, %v530
    %v538 = vadd.f32 %v536, %v537
    %v539 = vtanh.pop %v538
    %v540 = vmul.f32 %v529, %v539
    %v541 = vpack.c.bf16 %v540, %v540
    %542 = vmatprep.subr.bf16.mxu0 %v363
    %543 = vmatpush1.bf16.msra.mxu0 %v362
    %544 = vmatprep.subr.bf16.mxu0 %v367
    %545 = vmatpush1.bf16.msra.mxu0 %v366
    %546 = vmatprep.subr.bf16.mxu0 %v371
    %547 = vmatpush1.bf16.msra.mxu0 %v370
    %548 = vmatprep.subr.bf16.mxu0 %v375
    %549 = vmatpush1.bf16.msra.mxu0 %v374
    %550 = vmatprep.subr.bf16.mxu0 %v379
    %551 = vmatpush1.bf16.msra.mxu0 %v378
    %552 = vmatprep.subr.bf16.mxu0 %v383
    %553 = vmatpush1.bf16.msra.mxu0 %v382
    %554 = vmatprep.subr.bf16.mxu0 %v387
    %555 = vmatpush1.bf16.msra.mxu0 %v386
    %556 = vmatprep.subr.bf16.mxu0 %v391
    %557 = vmatpush1.bf16.msra.mxu0 %v390
    %558 = vmatprep.subr.bf16.mxu0 0
    %559 = vmatpush1.bf16.msra.mxu0 0
    %560 = vmatprep.subr.bf16.mxu0 0
    %561 = vmatpush1.bf16.msra.mxu0 0
    %562 = vmatprep.subr.bf16.mxu0 0
    %563 = vmatpush1.bf16.msra.mxu0 0
    %564 = vmatprep.subr.bf16.mxu0 0
    %565 = vmatpush1.bf16.msra.mxu0 0
    %566 = vmatprep.subr.bf16.mxu0 0
    %567 = vmatpush1.bf16.msra.mxu0 0
    %568 = vmatprep.subr.bf16.mxu0 0
    %569 = vmatpush1.bf16.msra.mxu0 0
    %570 = vmatprep.subr.bf16.mxu0 0
    %571 = vmatpush1.bf16.msra.mxu0 0
    %572 = vmatprep.subr.bf16.mxu0 0
    %573 = vmatpush1.bf16.msra.mxu0 0
    %574 = vmatprep.mubr.bf16.mxu0 0
    %575 = vmatmul.mubr.bf16.gmra.mrb[0].mxu0 %v541
    %v576 = vpop.f32.mrb[0].mxu0
    %v577 = vadd.f32 0.0, %v576
    %v578 = vpop.f32.mrb[0].mxu0
    %v579 = vadd.f32 0.0, %v578
    %v580 = vpop.f32.mrb[0].mxu0
    %v581 = vpop.f32.mrb[0].mxu0
    %582 = vdwg.mxu0
    %583 = vmatprep.subr.bf16.mxu0 %v365
    %584 = vmatpush1.bf16.msra.mxu0 %v364
    %585 = vmatprep.subr.bf16.mxu0 %v369
    %586 = vmatpush1.bf16.msra.mxu0 %v368
    %587 = vmatprep.subr.bf16.mxu0 %v373
    %588 = vmatpush1.bf16.msra.mxu0 %v372
    %589 = vmatprep.subr.bf16.mxu0 %v377
    %590 = vmatpush1.bf16.msra.mxu0 %v376
    %591 = vmatprep.subr.bf16.mxu0 %v381
    %592 = vmatpush1.bf16.msra.mxu0 %v380
    %593 = vmatprep.subr.bf16.mxu0 %v385
    %594 = vmatpush1.bf16.msra.mxu0 %v384
    %595 = vmatprep.subr.bf16.mxu0 %v389
    %596 = vmatpush1.bf16.msra.mxu0 %v388
    %597 = vmatprep.subr.bf16.mxu0 %v393
    %598 = vmatpush1.bf16.msra.mxu0 %v392
    %599 = vmatprep.subr.bf16.mxu0 0
    %600 = vmatpush1.bf16.msra.mxu0 0
    %601 = vmatprep.subr.bf16.mxu0 0
    %602 = vmatpush1.bf16.msra.mxu0 0
    %603 = vmatprep.subr.bf16.mxu0 0
    %604 = vmatpush1.bf16.msra.mxu0 0
    %605 = vmatprep.subr.bf16.mxu0 0
    %606 = vmatpush1.bf16.msra.mxu0 0
    %607 = vmatprep.subr.bf16.mxu0 0
    %608 = vmatpush1.bf16.msra.mxu0 0
    %609 = vmatprep.subr.bf16.mxu0 0
    %610 = vmatpush1.bf16.msra.mxu0 0
    %611 = vmatprep.subr.bf16.mxu0 0
    %612 = vmatpush1.bf16.msra.mxu0 0
    %613 = vmatprep.subr.bf16.mxu0 0
    %614 = vmatpush1.bf16.msra.mxu0 0
    %615 = vmatprep.mubr.bf16.mxu0 0
    %616 = vmatmul.mubr.bf16.gmra.mrb[0].mxu0 %v541
    %v617 = vpop.f32.mrb[0].mxu0
    %v618 = vadd.f32 0.0, %v617
    %v619 = vpop.f32.mrb[0].mxu0
    %v620 = vadd.f32 0.0, %v619
    %v621 = vpop.f32.mrb[0].mxu0
    %v622 = vpop.f32.mrb[0].mxu0
    %623 = vdwg.mxu0
    %v628 = vrot.slane %v577, 7
    %v629 = vrot.slane %v579, 7
    %v630 = vrot.slane %v618, 7
    %v631 = vrot.slane %v620, 7
    %v636 = vadd.f32 %v178, %v628
    %v637 = vadd.f32 %v180, %v629
    %v638 = vadd.f32 %v221, %v630
    %v639 = vadd.f32 %v223, %v631
    %v640 = vxor.u32 %v636, 2147483648
    %v641 = vxor.u32 %v637, 2147483648
    %v642 = vxor.u32 %v638, 2147483648
    %v643 = vmul.f32 %v640, 1.442695
    %v644 = vpow.pop %v643
    %v645 = vmul.f32 %v641, 1.442695
    %v646 = vpow.pop %v645
    %v647 = vmul.f32 %v642, 1.442695
    %v648 = vpow.pop %v647
    %v649 = vadd.f32 %v644, 1.0
    %v650 = vadd.f32 %v646, 1.0
    %v651 = vadd.f32 %v648, 1.0
    %v652 = vrcp.pop %v649
    %v653 = vmul.f32 1.0, %v652
    %v654 = vrcp.pop %v650
    %v655 = vmul.f32 1.0, %v654
    %v656 = vrcp.pop %v651
    %v657 = vmul.f32 1.0, %v656
    %v658 = vtanh.pop %v639
    %v660 = vrot.slane %v538, 7
    %v662 = vmul.f32 %v655, %v660
    %v663 = vmul.f32 %v653, %v658
    %v664 = vadd.f32 %v662, %v663
    %v665 = vtanh.pop %v664
    %v666 = vmul.f32 %v657, %v665
    %v667 = vpack.c.bf16 %v666, %v666
    %v669 = vshrl.u32 %v667, 16
    %672 = vmatprep.subr.bf16.mxu0 %v363
    %673 = vmatpush1.bf16.msra.mxu0 %v362
    %674 = vmatprep.subr.bf16.mxu0 %v367
    %675 = vmatpush1.bf16.msra.mxu0 %v366
    %676 = vmatprep.subr.bf16.mxu0 %v371
    %677 = vmatpush1.bf16.msra.mxu0 %v370
    %678 = vmatprep.subr.bf16.mxu0 %v375
    %679 = vmatpush1.bf16.msra.mxu0 %v374
    %680 = vmatprep.subr.bf16.mxu0 %v379
    %681 = vmatpush1.bf16.msra.mxu0 %v378
    %682 = vmatprep.subr.bf16.mxu0 %v383
    %683 = vmatpush1.bf16.msra.mxu0 %v382
    %684 = vmatprep.subr.bf16.mxu0 %v387
    %685 = vmatpush1.bf16.msra.mxu0 %v386
    %686 = vmatprep.subr.bf16.mxu0 %v391
    %687 = vmatpush1.bf16.msra.mxu0 %v390
    %688 = vmatprep.subr.bf16.mxu0 0
    %689 = vmatpush1.bf16.msra.mxu0 0
    %690 = vmatprep.subr.bf16.mxu0 0
    %691 = vmatpush1.bf16.msra.mxu0 0
    %692 = vmatprep.subr.bf16.mxu0 0
    %693 = vmatpush1.bf16.msra.mxu0 0
    %694 = vmatprep.subr.bf16.mxu0 0
    %695 = vmatpush1.bf16.msra.mxu0 0
    %696 = vmatprep.subr.bf16.mxu0 0
    %697 = vmatpush1.bf16.msra.mxu0 0
    %698 = vmatprep.subr.bf16.mxu0 0
    %699 = vmatpush1.bf16.msra.mxu0 0
    %700 = vmatprep.subr.bf16.mxu0 0
    %701 = vmatpush1.bf16.msra.mxu0 0
    %702 = vmatprep.subr.bf16.mxu0 0
    %703 = vmatpush1.bf16.msra.mxu0 0
    %704 = vmatprep.mubr.bf16.mxu0 0
    %705 = vmatmul.mubr.bf16.gmra.mrb[0].mxu0 %v669
    %v706 = vpop.f32.mrb[0].mxu0
    %v707 = vadd.f32 0.0, %v706
    %v708 = vpop.f32.mrb[0].mxu0
    %v709 = vadd.f32 0.0, %v708
    %v710 = vpop.f32.mrb[0].mxu0
    %v711 = vpop.f32.mrb[0].mxu0
    %712 = vdwg.mxu0
    %713 = vmatprep.subr.bf16.mxu0 %v365
    %714 = vmatpush1.bf16.msra.mxu0 %v364
    %715 = vmatprep.subr.bf16.mxu0 %v369
    %716 = vmatpush1.bf16.msra.mxu0 %v368
    %717 = vmatprep.subr.bf16.mxu0 %v373
    %718 = vmatpush1.bf16.msra.mxu0 %v372
    %719 = vmatprep.subr.bf16.mxu0 %v377
    %720 = vmatpush1.bf16.msra.mxu0 %v376
    %721 = vmatprep.subr.bf16.mxu0 %v381
    %722 = vmatpush1.bf16.msra.mxu0 %v380
    %723 = vmatprep.subr.bf16.mxu0 %v385
    %724 = vmatpush1.bf16.msra.mxu0 %v384
    %725 = vmatprep.subr.bf16.mxu0 %v389
    %726 = vmatpush1.bf16.msra.mxu0 %v388
    %727 = vmatprep.subr.bf16.mxu0 %v393
    %728 = vmatpush1.bf16.msra.mxu0 %v392
    %729 = vmatprep.subr.bf16.mxu0 0
    %730 = vmatpush1.bf16.msra.mxu0 0
    %731 = vmatprep.subr.bf16.mxu0 0
    %732 = vmatpush1.bf16.msra.mxu0 0
    %733 = vmatprep.subr.bf16.mxu0 0
    %734 = vmatpush1.bf16.msra.mxu0 0
    %735 = vmatprep.subr.bf16.mxu0 0
    %736 = vmatpush1.bf16.msra.mxu0 0
    %737 = vmatprep.subr.bf16.mxu0 0
    %738 = vmatpush1.bf16.msra.mxu0 0
    %739 = vmatprep.subr.bf16.mxu0 0
    %740 = vmatpush1.bf16.msra.mxu0 0
    %741 = vmatprep.subr.bf16.mxu0 0
    %742 = vmatpush1.bf16.msra.mxu0 0
    %743 = vmatprep.subr.bf16.mxu0 0
    %744 = vmatpush1.bf16.msra.mxu0 0
    %745 = vmatprep.mubr.bf16.mxu0 0
    %746 = vmatmul.mubr.bf16.gmra.mrb[0].mxu0 %v669
    %v747 = vpop.f32.mrb[0].mxu0
    %v748 = vadd.f32 0.0, %v747
    %v749 = vpop.f32.mrb[0].mxu0
    %v750 = vadd.f32 0.0, %v749
    %v751 = vpop.f32.mrb[0].mxu0
    %v752 = vpop.f32.mrb[0].mxu0
    %753 = vdwg.mxu0
    %v758 = vrot.slane %v707, 6
    %v759 = vrot.slane %v709, 6
    %v760 = vrot.slane %v748, 6
    %v761 = vrot.slane %v750, 6
    %v766 = vadd.f32 %v178, %v758
    %v767 = vadd.f32 %v180, %v759
    %v768 = vadd.f32 %v221, %v760
    %v769 = vadd.f32 %v223, %v761
    %v770 = vxor.u32 %v766, 2147483648
    %v771 = vxor.u32 %v767, 2147483648
    %v772 = vxor.u32 %v768, 2147483648
    %v773 = vmul.f32 %v770, 1.442695
    %v774 = vpow.pop %v773
    %v775 = vmul.f32 %v771, 1.442695
    %v776 = vpow.pop %v775
    %v777 = vmul.f32 %v772, 1.442695
    %v778 = vpow.pop %v777
    %v779 = vadd.f32 %v774, 1.0
    %v780 = vadd.f32 %v776, 1.0
    %v781 = vadd.f32 %v778, 1.0
    %v782 = vrcp.pop %v779
    %v783 = vmul.f32 1.0, %v782
    %v784 = vrcp.pop %v780
    %v785 = vmul.f32 1.0, %v784
    %v786 = vrcp.pop %v781
    %v787 = vmul.f32 1.0, %v786
    %v788 = vtanh.pop %v769
    %v790 = vrot.slane %v664, 7
    %v792 = vmul.f32 %v785, %v790
    %v793 = vmul.f32 %v783, %v788
    %v794 = vadd.f32 %v792, %v793
    %v795 = vtanh.pop %v794
    %v796 = vmul.f32 %v787, %v795
    %v797 = vpack.c.bf16 %v796, %v796
    %v799 = vrot.slane %v797, 1
    %801 = vmatprep.subr.bf16.mxu0 %v363
    %802 = vmatpush1.bf16.msra.mxu0 %v362
    %803 = vmatprep.subr.bf16.mxu0 %v367
    %804 = vmatpush1.bf16.msra.mxu0 %v366
    %805 = vmatprep.subr.bf16.mxu0 %v371
    %806 = vmatpush1.bf16.msra.mxu0 %v370
    %807 = vmatprep.subr.bf16.mxu0 %v375
    %808 = vmatpush1.bf16.msra.mxu0 %v374
    %809 = vmatprep.subr.bf16.mxu0 %v379
    %810 = vmatpush1.bf16.msra.mxu0 %v378
    %811 = vmatprep.subr.bf16.mxu0 %v383
    %812 = vmatpush1.bf16.msra.mxu0 %v382
    %813 = vmatprep.subr.bf16.mxu0 %v387
    %814 = vmatpush1.bf16.msra.mxu0 %v386
    %815 = vmatprep.subr.bf16.mxu0 %v391
    %816 = vmatpush1.bf16.msra.mxu0 %v390
    %817 = vmatprep.subr.bf16.mxu0 0
    %818 = vmatpush1.bf16.msra.mxu0 0
    %819 = vmatprep.subr.bf16.mxu0 0
    %820 = vmatpush1.bf16.msra.mxu0 0
    %821 = vmatprep.subr.bf16.mxu0 0
    %822 = vmatpush1.bf16.msra.mxu0 0
    %823 = vmatprep.subr.bf16.mxu0 0
    %824 = vmatpush1.bf16.msra.mxu0 0
    %825 = vmatprep.subr.bf16.mxu0 0
    %826 = vmatpush1.bf16.msra.mxu0 0
    %827 = vmatprep.subr.bf16.mxu0 0
    %828 = vmatpush1.bf16.msra.mxu0 0
    %829 = vmatprep.subr.bf16.mxu0 0
    %830 = vmatpush1.bf16.msra.mxu0 0
    %831 = vmatprep.subr.bf16.mxu0 0
    %832 = vmatpush1.bf16.msra.mxu0 0
    %833 = vmatprep.mubr.bf16.mxu0 0
    %834 = vmatmul.mubr.bf16.gmra.mrb[0].mxu0 %v799
    %v835 = vpop.f32.mrb[0].mxu0
    %v836 = vadd.f32 0.0, %v835
    %v837 = vpop.f32.mrb[0].mxu0
    %v838 = vadd.f32 0.0, %v837
    %v839 = vpop.f32.mrb[0].mxu0
    %v840 = vpop.f32.mrb[0].mxu0
    %841 = vdwg.mxu0
    %842 = vmatprep.subr.bf16.mxu0 %v365
    %843 = vmatpush1.bf16.msra.mxu0 %v364
    %844 = vmatprep.subr.bf16.mxu0 %v369
    %845 = vmatpush1.bf16.msra.mxu0 %v368
    %846 = vmatprep.subr.bf16.mxu0 %v373
    %847 = vmatpush1.bf16.msra.mxu0 %v372
    %848 = vmatprep.subr.bf16.mxu0 %v377
    %849 = vmatpush1.bf16.msra.mxu0 %v376
    %850 = vmatprep.subr.bf16.mxu0 %v381
    %851 = vmatpush1.bf16.msra.mxu0 %v380
    %852 = vmatprep.subr.bf16.mxu0 %v385
    %853 = vmatpush1.bf16.msra.mxu0 %v384
    %854 = vmatprep.subr.bf16.mxu0 %v389
    %855 = vmatpush1.bf16.msra.mxu0 %v388
    %856 = vmatprep.subr.bf16.mxu0 %v393
    %857 = vmatpush1.bf16.msra.mxu0 %v392
    %858 = vmatprep.subr.bf16.mxu0 0
    %859 = vmatpush1.bf16.msra.mxu0 0
    %860 = vmatprep.subr.bf16.mxu0 0
    %861 = vmatpush1.bf16.msra.mxu0 0
    %862 = vmatprep.subr.bf16.mxu0 0
    %863 = vmatpush1.bf16.msra.mxu0 0
    %864 = vmatprep.subr.bf16.mxu0 0
    %865 = vmatpush1.bf16.msra.mxu0 0
    %866 = vmatprep.subr.bf16.mxu0 0
    %867 = vmatpush1.bf16.msra.mxu0 0
    %868 = vmatprep.subr.bf16.mxu0 0
    %869 = vmatpush1.bf16.msra.mxu0 0
    %870 = vmatprep.subr.bf16.mxu0 0
    %871 = vmatpush1.bf16.msra.mxu0 0
    %872 = vmatprep.subr.bf16.mxu0 0
    %873 = vmatpush1.bf16.msra.mxu0 0
    %874 = vmatprep.mubr.bf16.mxu0 0
    %875 = vmatmul.mubr.bf16.gmra.mrb[0].mxu0 %v799
    %v876 = vpop.f32.mrb[0].mxu0
    %v877 = vadd.f32 0.0, %v876
    %v878 = vpop.f32.mrb[0].mxu0
    %v879 = vadd.f32 0.0, %v878
    %v880 = vpop.f32.mrb[0].mxu0
    %v881 = vpop.f32.mrb[0].mxu0
    %882 = vdwg.mxu0
    %v887 = vrot.slane %v836, 5
    %v888 = vrot.slane %v838, 5
    %v889 = vrot.slane %v877, 5
    %v890 = vrot.slane %v879, 5
    %v895 = vadd.f32 %v178, %v887
    %v896 = vadd.f32 %v180, %v888
    %v897 = vadd.f32 %v221, %v889
    %v898 = vadd.f32 %v223, %v890
    %v899 = vxor.u32 %v895, 2147483648
    %v900 = vxor.u32 %v896, 2147483648
    %v901 = vxor.u32 %v897, 2147483648
    %v902 = vmul.f32 %v899, 1.442695
    %v903 = vpow.pop %v902
    %v904 = vmul.f32 %v900, 1.442695
    %v905 = vpow.pop %v904
    %v906 = vmul.f32 %v901, 1.442695
    %v907 = vpow.pop %v906
    %v908 = vadd.f32 %v903, 1.0
    %v909 = vadd.f32 %v905, 1.0
    %v910 = vadd.f32 %v907, 1.0
    %v911 = vrcp.pop %v908
    %v912 = vmul.f32 1.0, %v911
    %v913 = vrcp.pop %v909
    %v914 = vmul.f32 1.0, %v913
    %v915 = vrcp.pop %v910
    %v916 = vmul.f32 1.0, %v915
    %v917 = vtanh.pop %v898
    %v919 = vrot.slane %v794, 7
    %v921 = vmul.f32 %v914, %v919
    %v922 = vmul.f32 %v912, %v917
    %v923 = vadd.f32 %v921, %v922
    %v924 = vtanh.pop %v923
    %v925 = vmul.f32 %v916, %v924
    %v926 = vpack.c.bf16 %v925, %v925
    %v928 = vshrl.u32 %v926, 16
    %v930 = vrot.slane %v928, 1
    %932 = vmatprep.subr.bf16.mxu0 %v363
    %933 = vmatpush1.bf16.msra.mxu0 %v362
    %934 = vmatprep.subr.bf16.mxu0 %v367
    %935 = vmatpush1.bf16.msra.mxu0 %v366
    %936 = vmatprep.subr.bf16.mxu0 %v371
    %937 = vmatpush1.bf16.msra.mxu0 %v370
    %938 = vmatprep.subr.bf16.mxu0 %v375
    %939 = vmatpush1.bf16.msra.mxu0 %v374
    %940 = vmatprep.subr.bf16.mxu0 %v379
    %941 = vmatpush1.bf16.msra.mxu0 %v378
    %942 = vmatprep.subr.bf16.mxu0 %v383
    %943 = vmatpush1.bf16.msra.mxu0 %v382
    %944 = vmatprep.subr.bf16.mxu0 %v387
    %945 = vmatpush1.bf16.msra.mxu0 %v386
    %946 = vmatprep.subr.bf16.mxu0 %v391
    %947 = vmatpush1.bf16.msra.mxu0 %v390
    %948 = vmatprep.subr.bf16.mxu0 0
    %949 = vmatpush1.bf16.msra.mxu0 0
    %950 = vmatprep.subr.bf16.mxu0 0
    %951 = vmatpush1.bf16.msra.mxu0 0
    %952 = vmatprep.subr.bf16.mxu0 0
    %953 = vmatpush1.bf16.msra.mxu0 0
    %954 = vmatprep.subr.bf16.mxu0 0
    %955 = vmatpush1.bf16.msra.mxu0 0
    %956 = vmatprep.subr.bf16.mxu0 0
    %957 = vmatpush1.bf16.msra.mxu0 0
    %958 = vmatprep.subr.bf16.mxu0 0
    %959 = vmatpush1.bf16.msra.mxu0 0
    %960 = vmatprep.subr.bf16.mxu0 0
    %961 = vmatpush1.bf16.msra.mxu0 0
    %962 = vmatprep.subr.bf16.mxu0 0
    %963 = vmatpush1.bf16.msra.mxu0 0
    %964 = vmatprep.mubr.bf16.mxu0 0
    %965 = vmatmul.mubr.bf16.gmra.mrb[0].mxu0 %v930
    %v966 = vpop.f32.mrb[0].mxu0
    %v967 = vadd.f32 0.0, %v966
    %v968 = vpop.f32.mrb[0].mxu0
    %v969 = vadd.f32 0.0, %v968
    %v970 = vpop.f32.mrb[0].mxu0
    %v971 = vpop.f32.mrb[0].mxu0
    %972 = vdwg.mxu0
    %973 = vmatprep.subr.bf16.mxu0 %v365
    %974 = vmatpush1.bf16.msra.mxu0 %v364
    %975 = vmatprep.subr.bf16.mxu0 %v369
    %976 = vmatpush1.bf16.msra.mxu0 %v368
    %977 = vmatprep.subr.bf16.mxu0 %v373
    %978 = vmatpush1.bf16.msra.mxu0 %v372
    %979 = vmatprep.subr.bf16.mxu0 %v377
    %980 = vmatpush1.bf16.msra.mxu0 %v376
    %981 = vmatprep.subr.bf16.mxu0 %v381
    %982 = vmatpush1.bf16.msra.mxu0 %v380
    %983 = vmatprep.subr.bf16.mxu0 %v385
    %984 = vmatpush1.bf16.msra.mxu0 %v384
    %985 = vmatprep.subr.bf16.mxu0 %v389
    %986 = vmatpush1.bf16.msra.mxu0 %v388
    %987 = vmatprep.subr.bf16.mxu0 %v393
    %988 = vmatpush1.bf16.msra.mxu0 %v392
    %989 = vmatprep.subr.bf16.mxu0 0
    %990 = vmatpush1.bf16.msra.mxu0 0
    %991 = vmatprep.subr.bf16.mxu0 0
    %992 = vmatpush1.bf16.msra.mxu0 0
    %993 = vmatprep.subr.bf16.mxu0 0
    %994 = vmatpush1.bf16.msra.mxu0 0
    %995 = vmatprep.subr.bf16.mxu0 0
    %996 = vmatpush1.bf16.msra.mxu0 0
    %997 = vmatprep.subr.bf16.mxu0 0
    %998 = vmatpush1.bf16.msra.mxu0 0
    %999 = vmatprep.subr.bf16.mxu0 0
    %1000 = vmatpush1.bf16.msra.mxu0 0
    %1001 = vmatprep.subr.bf16.mxu0 0
    %1002 = vmatpush1.bf16.msra.mxu0 0
    %1003 = vmatprep.subr.bf16.mxu0 0
    %1004 = vmatpush1.bf16.msra.mxu0 0
    %1005 = vmatprep.mubr.bf16.mxu0 0
    %1006 = vmatmul.mubr.bf16.gmra.mrb[0].mxu0 %v930
    %v1007 = vpop.f32.mrb[0].mxu0
    %v1008 = vadd.f32 0.0, %v1007
    %v1009 = vpop.f32.mrb[0].mxu0
    %v1010 = vadd.f32 0.0, %v1009
    %v1011 = vpop.f32.mrb[0].mxu0
    %v1012 = vpop.f32.mrb[0].mxu0
    %1013 = vdwg.mxu0
    %v1018 = vrot.slane %v967, 4
    %v1019 = vrot.slane %v969, 4
    %v1020 = vrot.slane %v1008, 4
    %v1021 = vrot.slane %v1010, 4
    %v1026 = vadd.f32 %v178, %v1018
    %v1027 = vadd.f32 %v180, %v1019
    %v1028 = vadd.f32 %v221, %v1020
    %v1029 = vadd.f32 %v223, %v1021
    %v1030 = vxor.u32 %v1026, 2147483648
    %v1031 = vxor.u32 %v1027, 2147483648
    %v1032 = vxor.u32 %v1028, 2147483648
    %v1033 = vmul.f32 %v1030, 1.442695
    %v1034 = vpow.pop %v1033
    %v1035 = vmul.f32 %v1031, 1.442695
    %v1036 = vpow.pop %v1035
    %v1037 = vmul.f32 %v1032, 1.442695
    %v1038 = vpow.pop %v1037
    %v1039 = vadd.f32 %v1034, 1.0
    %v1040 = vadd.f32 %v1036, 1.0
    %v1041 = vadd.f32 %v1038, 1.0
    %v1042 = vrcp.pop %v1039
    %v1043 = vmul.f32 1.0, %v1042
    %v1044 = vrcp.pop %v1040
    %v1045 = vmul.f32 1.0, %v1044
    %v1046 = vrcp.pop %v1041
    %v1047 = vmul.f32 1.0, %v1046
    %v1048 = vtanh.pop %v1029
    %v1050 = vrot.slane %v923, 7
    %v1052 = vmul.f32 %v1045, %v1050
    %v1053 = vmul.f32 %v1043, %v1048
    %v1054 = vadd.f32 %v1052, %v1053
    %v1055 = vtanh.pop %v1054
    %v1056 = vmul.f32 %v1047, %v1055
    %v1057 = vpack.c.bf16 %v1056, %v1056
    %v1059 = vrot.slane %v1057, 2
    %1061 = vmatprep.subr.bf16.mxu0 %v363
    %1062 = vmatpush1.bf16.msra.mxu0 %v362
    %1063 = vmatprep.subr.bf16.mxu0 %v367
    %1064 = vmatpush1.bf16.msra.mxu0 %v366
    %1065 = vmatprep.subr.bf16.mxu0 %v371
    %1066 = vmatpush1.bf16.msra.mxu0 %v370
    %1067 = vmatprep.subr.bf16.mxu0 %v375
    %1068 = vmatpush1.bf16.msra.mxu0 %v374
    %1069 = vmatprep.subr.bf16.mxu0 %v379
    %1070 = vmatpush1.bf16.msra.mxu0 %v378
    %1071 = vmatprep.subr.bf16.mxu0 %v383
    %1072 = vmatpush1.bf16.msra.mxu0 %v382
    %1073 = vmatprep.subr.bf16.mxu0 %v387
    %1074 = vmatpush1.bf16.msra.mxu0 %v386
    %1075 = vmatprep.subr.bf16.mxu0 %v391
    %1076 = vmatpush1.bf16.msra.mxu0 %v390
    %1077 = vmatprep.subr.bf16.mxu0 0
    %1078 = vmatpush1.bf16.msra.mxu0 0
    %1079 = vmatprep.subr.bf16.mxu0 0
    %1080 = vmatpush1.bf16.msra.mxu0 0
    %1081 = vmatprep.subr.bf16.mxu0 0
    %1082 = vmatpush1.bf16.msra.mxu0 0
    %1083 = vmatprep.subr.bf16.mxu0 0
    %1084 = vmatpush1.bf16.msra.mxu0 0
    %1085 = vmatprep.subr.bf16.mxu0 0
    %1086 = vmatpush1.bf16.msra.mxu0 0
    %1087 = vmatprep.subr.bf16.mxu0 0
    %1088 = vmatpush1.bf16.msra.mxu0 0
    %1089 = vmatprep.subr.bf16.mxu0 0
    %1090 = vmatpush1.bf16.msra.mxu0 0
    %1091 = vmatprep.subr.bf16.mxu0 0
    %1092 = vmatpush1.bf16.msra.mxu0 0
    %1093 = vmatprep.mubr.bf16.mxu0 0
    %1094 = vmatmul.mubr.bf16.gmra.mrb[0].mxu0 %v1059
    %v1095 = vpop.f32.mrb[0].mxu0
    %v1096 = vadd.f32 0.0, %v1095
    %v1097 = vpop.f32.mrb[0].mxu0
    %v1098 = vadd.f32 0.0, %v1097
    %v1099 = vpop.f32.mrb[0].mxu0
    %v1100 = vpop.f32.mrb[0].mxu0
    %1101 = vdwg.mxu0
    %1102 = vmatprep.subr.bf16.mxu0 %v365
    %1103 = vmatpush1.bf16.msra.mxu0 %v364
    %1104 = vmatprep.subr.bf16.mxu0 %v369
    %1105 = vmatpush1.bf16.msra.mxu0 %v368
    %1106 = vmatprep.subr.bf16.mxu0 %v373
    %1107 = vmatpush1.bf16.msra.mxu0 %v372
    %1108 = vmatprep.subr.bf16.mxu0 %v377
    %1109 = vmatpush1.bf16.msra.mxu0 %v376
    %1110 = vmatprep.subr.bf16.mxu0 %v381
    %1111 = vmatpush1.bf16.msra.mxu0 %v380
    %1112 = vmatprep.subr.bf16.mxu0 %v385
    %1113 = vmatpush1.bf16.msra.mxu0 %v384
    %1114 = vmatprep.subr.bf16.mxu0 %v389
    %1115 = vmatpush1.bf16.msra.mxu0 %v388
    %1116 = vmatprep.subr.bf16.mxu0 %v393
    %1117 = vmatpush1.bf16.msra.mxu0 %v392
    %1118 = vmatprep.subr.bf16.mxu0 0
    %1119 = vmatpush1.bf16.msra.mxu0 0
    %1120 = vmatprep.subr.bf16.mxu0 0
    %1121 = vmatpush1.bf16.msra.mxu0 0
    %1122 = vmatprep.subr.bf16.mxu0 0
    %1123 = vmatpush1.bf16.msra.mxu0 0
    %1124 = vmatprep.subr.bf16.mxu0 0
    %1125 = vmatpush1.bf16.msra.mxu0 0
    %1126 = vmatprep.subr.bf16.mxu0 0
    %1127 = vmatpush1.bf16.msra.mxu0 0
    %1128 = vmatprep.subr.bf16.mxu0 0
    %1129 = vmatpush1.bf16.msra.mxu0 0
    %1130 = vmatprep.subr.bf16.mxu0 0
    %1131 = vmatpush1.bf16.msra.mxu0 0
    %1132 = vmatprep.subr.bf16.mxu0 0
    %1133 = vmatpush1.bf16.msra.mxu0 0
    %1134 = vmatprep.mubr.bf16.mxu0 0
    %1135 = vmatmul.mubr.bf16.gmra.mrb[0].mxu0 %v1059
    %v1136 = vpop.f32.mrb[0].mxu0
    %v1137 = vadd.f32 0.0, %v1136
    %v1138 = vpop.f32.mrb[0].mxu0
    %v1139 = vadd.f32 0.0, %v1138
    %v1140 = vpop.f32.mrb[0].mxu0
    %v1141 = vpop.f32.mrb[0].mxu0
    %1142 = vdwg.mxu0
    %v1147 = vrot.slane %v1096, 3
    %v1148 = vrot.slane %v1098, 3
    %v1149 = vrot.slane %v1137, 3
    %v1150 = vrot.slane %v1139, 3
    %v1155 = vadd.f32 %v178, %v1147
    %v1156 = vadd.f32 %v180, %v1148
    %v1157 = vadd.f32 %v221, %v1149
    %v1158 = vadd.f32 %v223, %v1150
    %v1159 = vxor.u32 %v1155, 2147483648
    %v1160 = vxor.u32 %v1156, 2147483648
    %v1161 = vxor.u32 %v1157, 2147483648
    %v1162 = vmul.f32 %v1159, 1.442695
    %v1163 = vpow.pop %v1162
    %v1164 = vmul.f32 %v1160, 1.442695
    %v1165 = vpow.pop %v1164
    %v1166 = vmul.f32 %v1161, 1.442695
    %v1167 = vpow.pop %v1166
    %v1168 = vadd.f32 %v1163, 1.0
    %v1169 = vadd.f32 %v1165, 1.0
    %v1170 = vadd.f32 %v1167, 1.0
    %v1171 = vrcp.pop %v1168
    %v1172 = vmul.f32 1.0, %v1171
    %v1173 = vrcp.pop %v1169
    %v1174 = vmul.f32 1.0, %v1173
    %v1175 = vrcp.pop %v1170
    %v1176 = vmul.f32 1.0, %v1175
    %v1177 = vtanh.pop %v1158
    %v1179 = vrot.slane %v1054, 7
    %v1181 = vmul.f32 %v1174, %v1179
    %v1182 = vmul.f32 %v1172, %v1177
    %v1183 = vadd.f32 %v1181, %v1182
    %v1184 = vtanh.pop %v1183
    %v1185 = vmul.f32 %v1176, %v1184
    %v1186 = vpack.c.bf16 %v1185, %v1185
    %v1188 = vshrl.u32 %v1186, 16
    %v1190 = vrot.slane %v1188, 2
    %1192 = vmatprep.subr.bf16.mxu0 %v363
    %1193 = vmatpush1.bf16.msra.mxu0 %v362
    %1194 = vmatprep.subr.bf16.mxu0 %v367
    %1195 = vmatpush1.bf16.msra.mxu0 %v366
    %1196 = vmatprep.subr.bf16.mxu0 %v371
    %1197 = vmatpush1.bf16.msra.mxu0 %v370
    %1198 = vmatprep.subr.bf16.mxu0 %v375
    %1199 = vmatpush1.bf16.msra.mxu0 %v374
    %1200 = vmatprep.subr.bf16.mxu0 %v379
    %1201 = vmatpush1.bf16.msra.mxu0 %v378
    %1202 = vmatprep.subr.bf16.mxu0 %v383
    %1203 = vmatpush1.bf16.msra.mxu0 %v382
    %1204 = vmatprep.subr.bf16.mxu0 %v387
    %1205 = vmatpush1.bf16.msra.mxu0 %v386
    %1206 = vmatprep.subr.bf16.mxu0 %v391
    %1207 = vmatpush1.bf16.msra.mxu0 %v390
    %1208 = vmatprep.subr.bf16.mxu0 0
    %1209 = vmatpush1.bf16.msra.mxu0 0
    %1210 = vmatprep.subr.bf16.mxu0 0
    %1211 = vmatpush1.bf16.msra.mxu0 0
    %1212 = vmatprep.subr.bf16.mxu0 0
    %1213 = vmatpush1.bf16.msra.mxu0 0
    %1214 = vmatprep.subr.bf16.mxu0 0
    %1215 = vmatpush1.bf16.msra.mxu0 0
    %1216 = vmatprep.subr.bf16.mxu0 0
    %1217 = vmatpush1.bf16.msra.mxu0 0
    %1218 = vmatprep.subr.bf16.mxu0 0
    %1219 = vmatpush1.bf16.msra.mxu0 0
    %1220 = vmatprep.subr.bf16.mxu0 0
    %1221 = vmatpush1.bf16.msra.mxu0 0
    %1222 = vmatprep.subr.bf16.mxu0 0
    %1223 = vmatpush1.bf16.msra.mxu0 0
    %1224 = vmatprep.mubr.bf16.mxu0 0
    %1225 = vmatmul.mubr.bf16.gmra.mrb[0].mxu0 %v1190
    %v1226 = vpop.f32.mrb[0].mxu0
    %v1227 = vadd.f32 0.0, %v1226
    %v1228 = vpop.f32.mrb[0].mxu0
    %v1229 = vadd.f32 0.0, %v1228
    %v1230 = vpop.f32.mrb[0].mxu0
    %v1231 = vpop.f32.mrb[0].mxu0
    %1232 = vdwg.mxu0
    %1233 = vmatprep.subr.bf16.mxu0 %v365
    %1234 = vmatpush1.bf16.msra.mxu0 %v364
    %1235 = vmatprep.subr.bf16.mxu0 %v369
    %1236 = vmatpush1.bf16.msra.mxu0 %v368
    %1237 = vmatprep.subr.bf16.mxu0 %v373
    %1238 = vmatpush1.bf16.msra.mxu0 %v372
    %1239 = vmatprep.subr.bf16.mxu0 %v377
    %1240 = vmatpush1.bf16.msra.mxu0 %v376
    %1241 = vmatprep.subr.bf16.mxu0 %v381
    %1242 = vmatpush1.bf16.msra.mxu0 %v380
    %1243 = vmatprep.subr.bf16.mxu0 %v385
    %1244 = vmatpush1.bf16.msra.mxu0 %v384
    %1245 = vmatprep.subr.bf16.mxu0 %v389
    %1246 = vmatpush1.bf16.msra.mxu0 %v388
    %1247 = vmatprep.subr.bf16.mxu0 %v393
    %1248 = vmatpush1.bf16.msra.mxu0 %v392
    %1249 = vmatprep.subr.bf16.mxu0 0
    %1250 = vmatpush1.bf16.msra.mxu0 0
    %1251 = vmatprep.subr.bf16.mxu0 0
    %1252 = vmatpush1.bf16.msra.mxu0 0
    %1253 = vmatprep.subr.bf16.mxu0 0
    %1254 = vmatpush1.bf16.msra.mxu0 0
    %1255 = vmatprep.subr.bf16.mxu0 0
    %1256 = vmatpush1.bf16.msra.mxu0 0
    %1257 = vmatprep.subr.bf16.mxu0 0
    %1258 = vmatpush1.bf16.msra.mxu0 0
    %1259 = vmatprep.subr.bf16.mxu0 0
    %1260 = vmatpush1.bf16.msra.mxu0 0
    %1261 = vmatprep.subr.bf16.mxu0 0
    %1262 = vmatpush1.bf16.msra.mxu0 0
    %1263 = vmatprep.subr.bf16.mxu0 0
    %1264 = vmatpush1.bf16.msra.mxu0 0
    %1265 = vmatprep.mubr.bf16.mxu0 0
    %1266 = vmatmul.mubr.bf16.gmra.mrb[0].mxu0 %v1190
    %v1267 = vpop.f32.mrb[0].mxu0
    %v1268 = vadd.f32 0.0, %v1267
    %v1269 = vpop.f32.mrb[0].mxu0
    %v1270 = vadd.f32 0.0, %v1269
    %v1271 = vpop.f32.mrb[0].mxu0
    %v1272 = vpop.f32.mrb[0].mxu0
    %1273 = vdwg.mxu0
    %v1278 = vrot.slane %v1227, 2
    %v1279 = vrot.slane %v1229, 2
    %v1280 = vrot.slane %v1268, 2
    %v1281 = vrot.slane %v1270, 2
    %v1286 = vadd.f32 %v178, %v1278
    %v1287 = vadd.f32 %v180, %v1279
    %v1288 = vadd.f32 %v221, %v1280
    %v1289 = vadd.f32 %v223, %v1281
    %v1290 = vxor.u32 %v1286, 2147483648
    %v1291 = vxor.u32 %v1287, 2147483648
    %v1292 = vxor.u32 %v1288, 2147483648
    %v1293 = vmul.f32 %v1290, 1.442695
    %v1294 = vpow.pop %v1293
    %v1295 = vmul.f32 %v1291, 1.442695
    %v1296 = vpow.pop %v1295
    %v1297 = vmul.f32 %v1292, 1.442695
    %v1298 = vpow.pop %v1297
    %v1299 = vadd.f32 %v1294, 1.0
    %v1300 = vadd.f32 %v1296, 1.0
    %v1301 = vadd.f32 %v1298, 1.0
    %v1302 = vrcp.pop %v1299
    %v1303 = vmul.f32 1.0, %v1302
    %v1304 = vrcp.pop %v1300
    %v1305 = vmul.f32 1.0, %v1304
    %v1306 = vrcp.pop %v1301
    %v1307 = vmul.f32 1.0, %v1306
    %v1308 = vtanh.pop %v1289
    %v1310 = vrot.slane %v1183, 7
    %v1312 = vmul.f32 %v1305, %v1310
    %v1313 = vmul.f32 %v1303, %v1308
    %v1314 = vadd.f32 %v1312, %v1313
    %v1315 = vtanh.pop %v1314
    %v1316 = vmul.f32 %v1307, %v1315
    %v1317 = vpack.c.bf16 %v1316, %v1316
    %v1319 = vrot.slane %v1317, 3
    %1321 = vmatprep.subr.bf16.mxu0 %v363
    %1322 = vmatpush1.bf16.msra.mxu0 %v362
    %1323 = vmatprep.subr.bf16.mxu0 %v367
    %1324 = vmatpush1.bf16.msra.mxu0 %v366
    %1325 = vmatprep.subr.bf16.mxu0 %v371
    %1326 = vmatpush1.bf16.msra.mxu0 %v370
    %1327 = vmatprep.subr.bf16.mxu0 %v375
    %1328 = vmatpush1.bf16.msra.mxu0 %v374
    %1329 = vmatprep.subr.bf16.mxu0 %v379
    %1330 = vmatpush1.bf16.msra.mxu0 %v378
    %1331 = vmatprep.subr.bf16.mxu0 %v383
    %1332 = vmatpush1.bf16.msra.mxu0 %v382
    %1333 = vmatprep.subr.bf16.mxu0 %v387
    %1334 = vmatpush1.bf16.msra.mxu0 %v386
    %1335 = vmatprep.subr.bf16.mxu0 %v391
    %1336 = vmatpush1.bf16.msra.mxu0 %v390
    %1337 = vmatprep.subr.bf16.mxu0 0
    %1338 = vmatpush1.bf16.msra.mxu0 0
    %1339 = vmatprep.subr.bf16.mxu0 0
    %1340 = vmatpush1.bf16.msra.mxu0 0
    %1341 = vmatprep.subr.bf16.mxu0 0
    %1342 = vmatpush1.bf16.msra.mxu0 0
    %1343 = vmatprep.subr.bf16.mxu0 0
    %1344 = vmatpush1.bf16.msra.mxu0 0
    %1345 = vmatprep.subr.bf16.mxu0 0
    %1346 = vmatpush1.bf16.msra.mxu0 0
    %1347 = vmatprep.subr.bf16.mxu0 0
    %1348 = vmatpush1.bf16.msra.mxu0 0
    %1349 = vmatprep.subr.bf16.mxu0 0
    %1350 = vmatpush1.bf16.msra.mxu0 0
    %1351 = vmatprep.subr.bf16.mxu0 0
    %1352 = vmatpush1.bf16.msra.mxu0 0
    %1353 = vmatprep.mubr.bf16.mxu0 0
    %1354 = vmatmul.mubr.bf16.gmra.mrb[0].mxu0 %v1319
    %v1355 = vpop.f32.mrb[0].mxu0
    %v1356 = vadd.f32 0.0, %v1355
    %v1357 = vpop.f32.mrb[0].mxu0
    %v1358 = vadd.f32 0.0, %v1357
    %v1359 = vpop.f32.mrb[0].mxu0
    %v1360 = vpop.f32.mrb[0].mxu0
    %1361 = vdwg.mxu0
    %1362 = vmatprep.subr.bf16.mxu0 %v365
    %1363 = vmatpush1.bf16.msra.mxu0 %v364
    %1364 = vmatprep.subr.bf16.mxu0 %v369
    %1365 = vmatpush1.bf16.msra.mxu0 %v368
    %1366 = vmatprep.subr.bf16.mxu0 %v373
    %1367 = vmatpush1.bf16.msra.mxu0 %v372
    %1368 = vmatprep.subr.bf16.mxu0 %v377
    %1369 = vmatpush1.bf16.msra.mxu0 %v376
    %1370 = vmatprep.subr.bf16.mxu0 %v381
    %1371 = vmatpush1.bf16.msra.mxu0 %v380
    %1372 = vmatprep.subr.bf16.mxu0 %v385
    %1373 = vmatpush1.bf16.msra.mxu0 %v384
    %1374 = vmatprep.subr.bf16.mxu0 %v389
    %1375 = vmatpush1.bf16.msra.mxu0 %v388
    %1376 = vmatprep.subr.bf16.mxu0 %v393
    %1377 = vmatpush1.bf16.msra.mxu0 %v392
    %1378 = vmatprep.subr.bf16.mxu0 0
    %1379 = vmatpush1.bf16.msra.mxu0 0
    %1380 = vmatprep.subr.bf16.mxu0 0
    %1381 = vmatpush1.bf16.msra.mxu0 0
    %1382 = vmatprep.subr.bf16.mxu0 0
    %1383 = vmatpush1.bf16.msra.mxu0 0
    %1384 = vmatprep.subr.bf16.mxu0 0
    %1385 = vmatpush1.bf16.msra.mxu0 0
    %1386 = vmatprep.subr.bf16.mxu0 0
    %1387 = vmatpush1.bf16.msra.mxu0 0
    %1388 = vmatprep.subr.bf16.mxu0 0
    %1389 = vmatpush1.bf16.msra.mxu0 0
    %1390 = vmatprep.subr.bf16.mxu0 0
    %1391 = vmatpush1.bf16.msra.mxu0 0
    %1392 = vmatprep.subr.bf16.mxu0 0
    %1393 = vmatpush1.bf16.msra.mxu0 0
    %1394 = vmatprep.mubr.bf16.mxu0 0
    %1395 = vmatmul.mubr.bf16.gmra.mrb[0].mxu0 %v1319
    %v1396 = vpop.f32.mrb[0].mxu0
    %v1397 = vadd.f32 0.0, %v1396
    %v1398 = vpop.f32.mrb[0].mxu0
    %v1399 = vadd.f32 0.0, %v1398
    %v1400 = vpop.f32.mrb[0].mxu0
    %v1401 = vpop.f32.mrb[0].mxu0
    %1402 = vdwg.mxu0
    %v1407 = vrot.slane %v1356, 1
    %v1408 = vrot.slane %v1358, 1
    %v1409 = vrot.slane %v1397, 1
    %v1410 = vrot.slane %v1399, 1
    %v1415 = vadd.f32 %v178, %v1407
    %v1416 = vadd.f32 %v180, %v1408
    %v1417 = vadd.f32 %v221, %v1409
    %v1418 = vadd.f32 %v223, %v1410
    %v1419 = vxor.u32 %v1415, 2147483648
    %v1420 = vxor.u32 %v1416, 2147483648
    %v1421 = vxor.u32 %v1417, 2147483648
    %v1422 = vmul.f32 %v1419, 1.442695
    %v1423 = vpow.pop %v1422
    %v1424 = vmul.f32 %v1420, 1.442695
    %v1425 = vpow.pop %v1424
    %v1426 = vmul.f32 %v1421, 1.442695
    %v1427 = vpow.pop %v1426
    %v1428 = vadd.f32 %v1423, 1.0
    %v1429 = vadd.f32 %v1425, 1.0
    %v1430 = vadd.f32 %v1427, 1.0
    %v1431 = vrcp.pop %v1428
    %v1432 = vmul.f32 1.0, %v1431
    %v1433 = vrcp.pop %v1429
    %v1434 = vmul.f32 1.0, %v1433
    %v1435 = vrcp.pop %v1430
    %v1436 = vmul.f32 1.0, %v1435
    %v1437 = vtanh.pop %v1418
    %v1439 = vrot.slane %v1314, 7
    %v1441 = vmul.f32 %v1434, %v1439
    %v1442 = vmul.f32 %v1432, %v1437
    %v1443 = vadd.f32 %v1441, %v1442
    %v1444 = vtanh.pop %v1443
    %v1445 = vmul.f32 %v1436, %v1444
    %v1446 = vpack.c.bf16 %v1445, %v1445
    %v1448 = vshrl.u32 %v1446, 16
    %v1450 = vrot.slane %v1448, 3
    %1452 = vmatprep.subr.bf16.mxu0 %v363
    %1453 = vmatpush1.bf16.msra.mxu0 %v362
    %1454 = vmatprep.subr.bf16.mxu0 %v367
    %1455 = vmatpush1.bf16.msra.mxu0 %v366
    %1456 = vmatprep.subr.bf16.mxu0 %v371
    %1457 = vmatpush1.bf16.msra.mxu0 %v370
    %1458 = vmatprep.subr.bf16.mxu0 %v375
    %1459 = vmatpush1.bf16.msra.mxu0 %v374
    %1460 = vmatprep.subr.bf16.mxu0 %v379
    %1461 = vmatpush1.bf16.msra.mxu0 %v378
    %1462 = vmatprep.subr.bf16.mxu0 %v383
    %1463 = vmatpush1.bf16.msra.mxu0 %v382
    %1464 = vmatprep.subr.bf16.mxu0 %v387
    %1465 = vmatpush1.bf16.msra.mxu0 %v386
    %1466 = vmatprep.subr.bf16.mxu0 %v391
    %1467 = vmatpush1.bf16.msra.mxu0 %v390
    %1468 = vmatprep.subr.bf16.mxu0 0
    %1469 = vmatpush1.bf16.msra.mxu0 0
    %1470 = vmatprep.subr.bf16.mxu0 0
    %1471 = vmatpush1.bf16.msra.mxu0 0
    %1472 = vmatprep.subr.bf16.mxu0 0
    %1473 = vmatpush1.bf16.msra.mxu0 0
    %1474 = vmatprep.subr.bf16.mxu0 0
    %1475 = vmatpush1.bf16.msra.mxu0 0
    %1476 = vmatprep.subr.bf16.mxu0 0
    %1477 = vmatpush1.bf16.msra.mxu0 0
    %1478 = vmatprep.subr.bf16.mxu0 0
    %1479 = vmatpush1.bf16.msra.mxu0 0
    %1480 = vmatprep.subr.bf16.mxu0 0
    %1481 = vmatpush1.bf16.msra.mxu0 0
    %1482 = vmatprep.subr.bf16.mxu0 0
    %1483 = vmatpush1.bf16.msra.mxu0 0
    %1484 = vmatprep.mubr.bf16.mxu0 0
    %1485 = vmatmul.mubr.bf16.gmra.mrb[0].mxu0 %v1450
    %v1486 = vpop.f32.mrb[0].mxu0
    %v1487 = vadd.f32 0.0, %v1486
    %v1488 = vpop.f32.mrb[0].mxu0
    %v1489 = vadd.f32 0.0, %v1488
    %v1490 = vpop.f32.mrb[0].mxu0
    %v1491 = vpop.f32.mrb[0].mxu0
    %1492 = vdwg.mxu0
    %1493 = vmatprep.subr.bf16.mxu0 %v365
    %1494 = vmatpush1.bf16.msra.mxu0 %v364
    %1495 = vmatprep.subr.bf16.mxu0 %v369
    %1496 = vmatpush1.bf16.msra.mxu0 %v368
    %1497 = vmatprep.subr.bf16.mxu0 %v373
    %1498 = vmatpush1.bf16.msra.mxu0 %v372
    %1499 = vmatprep.subr.bf16.mxu0 %v377
    %1500 = vmatpush1.bf16.msra.mxu0 %v376
    %1501 = vmatprep.subr.bf16.mxu0 %v381
    %1502 = vmatpush1.bf16.msra.mxu0 %v380
    %1503 = vmatprep.subr.bf16.mxu0 %v385
    %1504 = vmatpush1.bf16.msra.mxu0 %v384
    %1505 = vmatprep.subr.bf16.mxu0 %v389
    %1506 = vmatpush1.bf16.msra.mxu0 %v388
    %1507 = vmatprep.subr.bf16.mxu0 %v393
    %1508 = vmatpush1.bf16.msra.mxu0 %v392
    %1509 = vmatprep.subr.bf16.mxu0 0
    %1510 = vmatpush1.bf16.msra.mxu0 0
    %1511 = vmatprep.subr.bf16.mxu0 0
    %1512 = vmatpush1.bf16.msra.mxu0 0
    %1513 = vmatprep.subr.bf16.mxu0 0
    %1514 = vmatpush1.bf16.msra.mxu0 0
    %1515 = vmatprep.subr.bf16.mxu0 0
    %1516 = vmatpush1.bf16.msra.mxu0 0
    %1517 = vmatprep.subr.bf16.mxu0 0
    %1518 = vmatpush1.bf16.msra.mxu0 0
    %1519 = vmatprep.subr.bf16.mxu0 0
    %1520 = vmatpush1.bf16.msra.mxu0 0
    %1521 = vmatprep.subr.bf16.mxu0 0
    %1522 = vmatpush1.bf16.msra.mxu0 0
    %1523 = vmatprep.subr.bf16.mxu0 0
    %1524 = vmatpush1.bf16.msra.mxu0 0
    %1525 = vmatprep.mubr.bf16.mxu0 0
    %1526 = vmatmul.mubr.bf16.gmra.mrb[0].mxu0 %v1450
    %v1527 = vpop.f32.mrb[0].mxu0
    %v1528 = vadd.f32 0.0, %v1527
    %v1529 = vpop.f32.mrb[0].mxu0
    %v1530 = vadd.f32 0.0, %v1529
    %v1531 = vpop.f32.mrb[0].mxu0
    %v1532 = vpop.f32.mrb[0].mxu0
    %1533 = vdwg.mxu0
    %v1534 = vadd.f32 %v182, %v1487
    %v1535 = vadd.f32 %v184, %v1489
    %v1536 = vadd.f32 %v225, %v1528
    %v1537 = vadd.f32 %v227, %v1530
    %v1538 = vxor.u32 %v1534, 2147483648
    %v1539 = vxor.u32 %v1535, 2147483648
    %v1540 = vxor.u32 %v1536, 2147483648
    %v1541 = vmul.f32 %v1538, 1.442695
    %v1542 = vpow.pop %v1541
    %v1543 = vmul.f32 %v1539, 1.442695
    %v1544 = vpow.pop %v1543
    %v1545 = vmul.f32 %v1540, 1.442695
    %v1546 = vpow.pop %v1545
    %v1547 = vadd.f32 %v1542, 1.0
    %v1548 = vadd.f32 %v1544, 1.0
    %v1549 = vadd.f32 %v1546, 1.0
    %v1550 = vrcp.pop %v1547
    %v1551 = vmul.f32 1.0, %v1550
    %v1552 = vrcp.pop %v1548
    %v1553 = vmul.f32 1.0, %v1552
    %v1554 = vrcp.pop %v1549
    %v1555 = vmul.f32 1.0, %v1554
    %v1556 = vtanh.pop %v1537
    %v1558 = vrot.slane %v1443, 7
    %v1560 = vmul.f32 %v1553, %v1558
    %v1561 = vmul.f32 %v1551, %v1556
    %v1562 = vadd.f32 %v1560, %v1561
    %v1563 = vtanh.pop %v1562
    %v1564 = vmul.f32 %v1555, %v1563
    %v1565 = vpack.c.bf16 %v1564, %v1564
    %1566 = vmatprep.subr.bf16.mxu0 %v363
    %1567 = vmatpush1.bf16.msra.mxu0 %v362
    %1568 = vmatprep.subr.bf16.mxu0 %v367
    %1569 = vmatpush1.bf16.msra.mxu0 %v366
    %1570 = vmatprep.subr.bf16.mxu0 %v371
    %1571 = vmatpush1.bf16.msra.mxu0 %v370
    %1572 = vmatprep.subr.bf16.mxu0 %v375
    %1573 = vmatpush1.bf16.msra.mxu0 %v374
    %1574 = vmatprep.subr.bf16.mxu0 %v379
    %1575 = vmatpush1.bf16.msra.mxu0 %v378
    %1576 = vmatprep.subr.bf16.mxu0 %v383
    %1577 = vmatpush1.bf16.msra.mxu0 %v382
    %1578 = vmatprep.subr.bf16.mxu0 %v387
    %1579 = vmatpush1.bf16.msra.mxu0 %v386
    %1580 = vmatprep.subr.bf16.mxu0 %v391
    %1581 = vmatpush1.bf16.msra.mxu0 %v390
    %1582 = vmatprep.subr.bf16.mxu0 0
    %1583 = vmatpush1.bf16.msra.mxu0 0
    %1584 = vmatprep.subr.bf16.mxu0 0
    %1585 = vmatpush1.bf16.msra.mxu0 0
    %1586 = vmatprep.subr.bf16.mxu0 0
    %1587 = vmatpush1.bf16.msra.mxu0 0
    %1588 = vmatprep.subr.bf16.mxu0 0
    %1589 = vmatpush1.bf16.msra.mxu0 0
    %1590 = vmatprep.subr.bf16.mxu0 0
    %1591 = vmatpush1.bf16.msra.mxu0 0
    %1592 = vmatprep.subr.bf16.mxu0 0
    %1593 = vmatpush1.bf16.msra.mxu0 0
    %1594 = vmatprep.subr.bf16.mxu0 0
    %1595 = vmatpush1.bf16.msra.mxu0 0
    %1596 = vmatprep.subr.bf16.mxu0 0
    %1597 = vmatpush1.bf16.msra.mxu0 0
    %1598 = vmatprep.mubr.bf16.mxu0 0
    %1599 = vmatmul.mubr.bf16.gmra.mrb[0].mxu0 %v1565
    %v1600 = vpop.f32.mrb[0].mxu0
    %v1601 = vadd.f32 0.0, %v1600
    %v1602 = vpop.f32.mrb[0].mxu0
    %v1603 = vadd.f32 0.0, %v1602
    %v1604 = vpop.f32.mrb[0].mxu0
    %v1605 = vpop.f32.mrb[0].mxu0
    %1606 = vdwg.mxu0
    %1607 = vmatprep.subr.bf16.mxu0 %v365
    %1608 = vmatpush1.bf16.msra.mxu0 %v364
    %1609 = vmatprep.subr.bf16.mxu0 %v369
    %1610 = vmatpush1.bf16.msra.mxu0 %v368
    %1611 = vmatprep.subr.bf16.mxu0 %v373
    %1612 = vmatpush1.bf16.msra.mxu0 %v372
    %1613 = vmatprep.subr.bf16.mxu0 %v377
    %1614 = vmatpush1.bf16.msra.mxu0 %v376
    %1615 = vmatprep.subr.bf16.mxu0 %v381
    %1616 = vmatpush1.bf16.msra.mxu0 %v380
    %1617 = vmatprep.subr.bf16.mxu0 %v385
    %1618 = vmatpush1.bf16.msra.mxu0 %v384
    %1619 = vmatprep.subr.bf16.mxu0 %v389
    %1620 = vmatpush1.bf16.msra.mxu0 %v388
    %1621 = vmatprep.subr.bf16.mxu0 %v393
    %1622 = vmatpush1.bf16.msra.mxu0 %v392
    %1623 = vmatprep.subr.bf16.mxu0 0
    %1624 = vmatpush1.bf16.msra.mxu0 0
    %1625 = vmatprep.subr.bf16.mxu0 0
    %1626 = vmatpush1.bf16.msra.mxu0 0
    %1627 = vmatprep.subr.bf16.mxu0 0
    %1628 = vmatpush1.bf16.msra.mxu0 0
    %1629 = vmatprep.subr.bf16.mxu0 0
    %1630 = vmatpush1.bf16.msra.mxu0 0
    %1631 = vmatprep.subr.bf16.mxu0 0
    %1632 = vmatpush1.bf16.msra.mxu0 0
    %1633 = vmatprep.subr.bf16.mxu0 0
    %1634 = vmatpush1.bf16.msra.mxu0 0
    %1635 = vmatprep.subr.bf16.mxu0 0
    %1636 = vmatpush1.bf16.msra.mxu0 0
    %1637 = vmatprep.subr.bf16.mxu0 0
    %1638 = vmatpush1.bf16.msra.mxu0 0
    %1639 = vmatprep.mubr.bf16.mxu0 0
    %1640 = vmatmul.mubr.bf16.gmra.mrb[0].mxu0 %v1565
    %v1641 = vpop.f32.mrb[0].mxu0
    %v1642 = vadd.f32 0.0, %v1641
    %v1643 = vpop.f32.mrb[0].mxu0
    %v1644 = vadd.f32 0.0, %v1643
    %v1645 = vpop.f32.mrb[0].mxu0
    %v1646 = vpop.f32.mrb[0].mxu0
    %1647 = vdwg.mxu0
    %v1652 = vrot.slane %v1601, 7
    %v1653 = vrot.slane %v1603, 7
    %v1654 = vrot.slane %v1642, 7
    %v1655 = vrot.slane %v1644, 7
    %v1660 = vadd.f32 %v182, %v1652
    %v1661 = vadd.f32 %v184, %v1653
    %v1662 = vadd.f32 %v225, %v1654
    %v1663 = vadd.f32 %v227, %v1655
    %v1664 = vxor.u32 %v1660, 2147483648
    %v1665 = vxor.u32 %v1661, 2147483648
    %v1666 = vxor.u32 %v1662, 2147483648
    %v1667 = vmul.f32 %v1664, 1.442695
    %v1668 = vpow.pop %v1667
    %v1669 = vmul.f32 %v1665, 1.442695
    %v1670 = vpow.pop %v1669
    %v1671 = vmul.f32 %v1666, 1.442695
    %v1672 = vpow.pop %v1671
    %v1673 = vadd.f32 %v1668, 1.0
    %v1674 = vadd.f32 %v1670, 1.0
    %v1675 = vadd.f32 %v1672, 1.0
    %v1676 = vrcp.pop %v1673
    %v1677 = vmul.f32 1.0, %v1676
    %v1678 = vrcp.pop %v1674
    %v1679 = vmul.f32 1.0, %v1678
    %v1680 = vrcp.pop %v1675
    %v1681 = vmul.f32 1.0, %v1680
    %v1682 = vtanh.pop %v1663
    %v1684 = vrot.slane %v1562, 7
    %v1686 = vmul.f32 %v1679, %v1684
    %v1687 = vmul.f32 %v1677, %v1682
    %v1688 = vadd.f32 %v1686, %v1687
    %v1689 = vtanh.pop %v1688
    %v1690 = vmul.f32 %v1681, %v1689
    %v1691 = vpack.c.bf16 %v1690, %v1690
    %v1693 = vshrl.u32 %v1691, 16
    %1696 = vmatprep.subr.bf16.mxu0 %v363
    %1697 = vmatpush1.bf16.msra.mxu0 %v362
    %1698 = vmatprep.subr.bf16.mxu0 %v367
    %1699 = vmatpush1.bf16.msra.mxu0 %v366
    %1700 = vmatprep.subr.bf16.mxu0 %v371
    %1701 = vmatpush1.bf16.msra.mxu0 %v370
    %1702 = vmatprep.subr.bf16.mxu0 %v375
    %1703 = vmatpush1.bf16.msra.mxu0 %v374
    %1704 = vmatprep.subr.bf16.mxu0 %v379
    %1705 = vmatpush1.bf16.msra.mxu0 %v378
    %1706 = vmatprep.subr.bf16.mxu0 %v383
    %1707 = vmatpush1.bf16.msra.mxu0 %v382
    %1708 = vmatprep.subr.bf16.mxu0 %v387
    %1709 = vmatpush1.bf16.msra.mxu0 %v386
    %1710 = vmatprep.subr.bf16.mxu0 %v391
    %1711 = vmatpush1.bf16.msra.mxu0 %v390
    %1712 = vmatprep.subr.bf16.mxu0 0
    %1713 = vmatpush1.bf16.msra.mxu0 0
    %1714 = vmatprep.subr.bf16.mxu0 0
    %1715 = vmatpush1.bf16.msra.mxu0 0
    %1716 = vmatprep.subr.bf16.mxu0 0
    %1717 = vmatpush1.bf16.msra.mxu0 0
    %1718 = vmatprep.subr.bf16.mxu0 0
    %1719 = vmatpush1.bf16.msra.mxu0 0
    %1720 = vmatprep.subr.bf16.mxu0 0
    %1721 = vmatpush1.bf16.msra.mxu0 0
    %1722 = vmatprep.subr.bf16.mxu0 0
    %1723 = vmatpush1.bf16.msra.mxu0 0
    %1724 = vmatprep.subr.bf16.mxu0 0
    %1725 = vmatpush1.bf16.msra.mxu0 0
    %1726 = vmatprep.subr.bf16.mxu0 0
    %1727 = vmatpush1.bf16.msra.mxu0 0
    %1728 = vmatprep.mubr.bf16.mxu0 0
    %1729 = vmatmul.mubr.bf16.gmra.mrb[0].mxu0 %v1693
    %v1730 = vpop.f32.mrb[0].mxu0
    %v1731 = vadd.f32 0.0, %v1730
    %v1732 = vpop.f32.mrb[0].mxu0
    %v1733 = vadd.f32 0.0, %v1732
    %v1734 = vpop.f32.mrb[0].mxu0
    %v1735 = vpop.f32.mrb[0].mxu0
    %1736 = vdwg.mxu0
    %1737 = vmatprep.subr.bf16.mxu0 %v365
    %1738 = vmatpush1.bf16.msra.mxu0 %v364
    %1739 = vmatprep.subr.bf16.mxu0 %v369
    %1740 = vmatpush1.bf16.msra.mxu0 %v368
    %1741 = vmatprep.subr.bf16.mxu0 %v373
    %1742 = vmatpush1.bf16.msra.mxu0 %v372
    %1743 = vmatprep.subr.bf16.mxu0 %v377
    %1744 = vmatpush1.bf16.msra.mxu0 %v376
    %1745 = vmatprep.subr.bf16.mxu0 %v381
    %1746 = vmatpush1.bf16.msra.mxu0 %v380
    %1747 = vmatprep.subr.bf16.mxu0 %v385
    %1748 = vmatpush1.bf16.msra.mxu0 %v384
    %1749 = vmatprep.subr.bf16.mxu0 %v389
    %1750 = vmatpush1.bf16.msra.mxu0 %v388
    %1751 = vmatprep.subr.bf16.mxu0 %v393
    %1752 = vmatpush1.bf16.msra.mxu0 %v392
    %1753 = vmatprep.subr.bf16.mxu0 0
    %1754 = vmatpush1.bf16.msra.mxu0 0
    %1755 = vmatprep.subr.bf16.mxu0 0
    %1756 = vmatpush1.bf16.msra.mxu0 0
    %1757 = vmatprep.subr.bf16.mxu0 0
    %1758 = vmatpush1.bf16.msra.mxu0 0
    %1759 = vmatprep.subr.bf16.mxu0 0
    %1760 = vmatpush1.bf16.msra.mxu0 0
    %1761 = vmatprep.subr.bf16.mxu0 0
    %1762 = vmatpush1.bf16.msra.mxu0 0
    %1763 = vmatprep.subr.bf16.mxu0 0
    %1764 = vmatpush1.bf16.msra.mxu0 0
    %1765 = vmatprep.subr.bf16.mxu0 0
    %1766 = vmatpush1.bf16.msra.mxu0 0
    %1767 = vmatprep.subr.bf16.mxu0 0
    %1768 = vmatpush1.bf16.msra.mxu0 0
    %1769 = vmatprep.mubr.bf16.mxu0 0
    %1770 = vmatmul.mubr.bf16.gmra.mrb[0].mxu0 %v1693
    %v1771 = vpop.f32.mrb[0].mxu0
    %v1772 = vadd.f32 0.0, %v1771
    %v1773 = vpop.f32.mrb[0].mxu0
    %v1774 = vadd.f32 0.0, %v1773
    %v1775 = vpop.f32.mrb[0].mxu0
    %v1776 = vpop.f32.mrb[0].mxu0
    %1777 = vdwg.mxu0
    %v1782 = vrot.slane %v1731, 6
    %v1783 = vrot.slane %v1733, 6
    %v1784 = vrot.slane %v1772, 6
    %v1785 = vrot.slane %v1774, 6
    %v1790 = vadd.f32 %v182, %v1782
    %v1791 = vadd.f32 %v184, %v1783
    %v1792 = vadd.f32 %v225, %v1784
    %v1793 = vadd.f32 %v227, %v1785
    %v1794 = vxor.u32 %v1790, 2147483648
    %v1795 = vxor.u32 %v1791, 2147483648
    %v1796 = vxor.u32 %v1792, 2147483648
    %v1797 = vmul.f32 %v1794, 1.442695
    %v1798 = vpow.pop %v1797
    %v1799 = vmul.f32 %v1795, 1.442695
    %v1800 = vpow.pop %v1799
    %v1801 = vmul.f32 %v1796, 1.442695
    %v1802 = vpow.pop %v1801
    %v1803 = vadd.f32 %v1798, 1.0
    %v1804 = vadd.f32 %v1800, 1.0
    %v1805 = vadd.f32 %v1802, 1.0
    %v1806 = vrcp.pop %v1803
    %v1807 = vmul.f32 1.0, %v1806
    %v1808 = vrcp.pop %v1804
    %v1809 = vmul.f32 1.0, %v1808
    %v1810 = vrcp.pop %v1805
    %v1811 = vmul.f32 1.0, %v1810
    %v1812 = vtanh.pop %v1793
    %v1814 = vrot.slane %v1688, 7
    %v1816 = vmul.f32 %v1809, %v1814
    %v1817 = vmul.f32 %v1807, %v1812
    %v1818 = vadd.f32 %v1816, %v1817
    %v1819 = vtanh.pop %v1818
    %v1820 = vmul.f32 %v1811, %v1819
    %v1821 = vpack.c.bf16 %v1820, %v1820
    %v1823 = vrot.slane %v1821, 1
    %1825 = vmatprep.subr.bf16.mxu0 %v363
    %1826 = vmatpush1.bf16.msra.mxu0 %v362
    %1827 = vmatprep.subr.bf16.mxu0 %v367
    %1828 = vmatpush1.bf16.msra.mxu0 %v366
    %1829 = vmatprep.subr.bf16.mxu0 %v371
    %1830 = vmatpush1.bf16.msra.mxu0 %v370
    %1831 = vmatprep.subr.bf16.mxu0 %v375
    %1832 = vmatpush1.bf16.msra.mxu0 %v374
    %1833 = vmatprep.subr.bf16.mxu0 %v379
    %1834 = vmatpush1.bf16.msra.mxu0 %v378
    %1835 = vmatprep.subr.bf16.mxu0 %v383
    %1836 = vmatpush1.bf16.msra.mxu0 %v382
    %1837 = vmatprep.subr.bf16.mxu0 %v387
    %1838 = vmatpush1.bf16.msra.mxu0 %v386
    %1839 = vmatprep.subr.bf16.mxu0 %v391
    %1840 = vmatpush1.bf16.msra.mxu0 %v390
    %1841 = vmatprep.subr.bf16.mxu0 0
    %1842 = vmatpush1.bf16.msra.mxu0 0
    %1843 = vmatprep.subr.bf16.mxu0 0
    %1844 = vmatpush1.bf16.msra.mxu0 0
    %1845 = vmatprep.subr.bf16.mxu0 0
    %1846 = vmatpush1.bf16.msra.mxu0 0
    %1847 = vmatprep.subr.bf16.mxu0 0
    %1848 = vmatpush1.bf16.msra.mxu0 0
    %1849 = vmatprep.subr.bf16.mxu0 0
    %1850 = vmatpush1.bf16.msra.mxu0 0
    %1851 = vmatprep.subr.bf16.mxu0 0
    %1852 = vmatpush1.bf16.msra.mxu0 0
    %1853 = vmatprep.subr.bf16.mxu0 0
    %1854 = vmatpush1.bf16.msra.mxu0 0
    %1855 = vmatprep.subr.bf16.mxu0 0
    %1856 = vmatpush1.bf16.msra.mxu0 0
    %1857 = vmatprep.mubr.bf16.mxu0 0
    %1858 = vmatmul.mubr.bf16.gmra.mrb[0].mxu0 %v1823
    %v1859 = vpop.f32.mrb[0].mxu0
    %v1860 = vadd.f32 0.0, %v1859
    %v1861 = vpop.f32.mrb[0].mxu0
    %v1862 = vadd.f32 0.0, %v1861
    %v1863 = vpop.f32.mrb[0].mxu0
    %v1864 = vpop.f32.mrb[0].mxu0
    %1865 = vdwg.mxu0
    %1866 = vmatprep.subr.bf16.mxu0 %v365
    %1867 = vmatpush1.bf16.msra.mxu0 %v364
    %1868 = vmatprep.subr.bf16.mxu0 %v369
    %1869 = vmatpush1.bf16.msra.mxu0 %v368
    %1870 = vmatprep.subr.bf16.mxu0 %v373
    %1871 = vmatpush1.bf16.msra.mxu0 %v372
    %1872 = vmatprep.subr.bf16.mxu0 %v377
    %1873 = vmatpush1.bf16.msra.mxu0 %v376
    %1874 = vmatprep.subr.bf16.mxu0 %v381
    %1875 = vmatpush1.bf16.msra.mxu0 %v380
    %1876 = vmatprep.subr.bf16.mxu0 %v385
    %1877 = vmatpush1.bf16.msra.mxu0 %v384
    %1878 = vmatprep.subr.bf16.mxu0 %v389
    %1879 = vmatpush1.bf16.msra.mxu0 %v388
    %1880 = vmatprep.subr.bf16.mxu0 %v393
    %1881 = vmatpush1.bf16.msra.mxu0 %v392
    %1882 = vmatprep.subr.bf16.mxu0 0
    %1883 = vmatpush1.bf16.msra.mxu0 0
    %1884 = vmatprep.subr.bf16.mxu0 0
    %1885 = vmatpush1.bf16.msra.mxu0 0
    %1886 = vmatprep.subr.bf16.mxu0 0
    %1887 = vmatpush1.bf16.msra.mxu0 0
    %1888 = vmatprep.subr.bf16.mxu0 0
    %1889 = vmatpush1.bf16.msra.mxu0 0
    %1890 = vmatprep.subr.bf16.mxu0 0
    %1891 = vmatpush1.bf16.msra.mxu0 0
    %1892 = vmatprep.subr.bf16.mxu0 0
    %1893 = vmatpush1.bf16.msra.mxu0 0
    %1894 = vmatprep.subr.bf16.mxu0 0
    %1895 = vmatpush1.bf16.msra.mxu0 0
    %1896 = vmatprep.subr.bf16.mxu0 0
    %1897 = vmatpush1.bf16.msra.mxu0 0
    %1898 = vmatprep.mubr.bf16.mxu0 0
    %1899 = vmatmul.mubr.bf16.gmra.mrb[0].mxu0 %v1823
    %v1900 = vpop.f32.mrb[0].mxu0
    %v1901 = vadd.f32 0.0, %v1900
    %v1902 = vpop.f32.mrb[0].mxu0
    %v1903 = vadd.f32 0.0, %v1902
    %v1904 = vpop.f32.mrb[0].mxu0
    %v1905 = vpop.f32.mrb[0].mxu0
    %1906 = vdwg.mxu0
    %v1911 = vrot.slane %v1860, 5
    %v1912 = vrot.slane %v1862, 5
    %v1913 = vrot.slane %v1901, 5
    %v1914 = vrot.slane %v1903, 5
    %v1919 = vadd.f32 %v182, %v1911
    %v1920 = vadd.f32 %v184, %v1912
    %v1921 = vadd.f32 %v225, %v1913
    %v1922 = vadd.f32 %v227, %v1914
    %v1923 = vxor.u32 %v1919, 2147483648
    %v1924 = vxor.u32 %v1920, 2147483648
    %v1925 = vxor.u32 %v1921, 2147483648
    %v1926 = vmul.f32 %v1923, 1.442695
    %v1927 = vpow.pop %v1926
    %v1928 = vmul.f32 %v1924, 1.442695
    %v1929 = vpow.pop %v1928
    %v1930 = vmul.f32 %v1925, 1.442695
    %v1931 = vpow.pop %v1930
    %v1932 = vadd.f32 %v1927, 1.0
    %v1933 = vadd.f32 %v1929, 1.0
    %v1934 = vadd.f32 %v1931, 1.0
    %v1935 = vrcp.pop %v1932
    %v1936 = vmul.f32 1.0, %v1935
    %v1937 = vrcp.pop %v1933
    %v1938 = vmul.f32 1.0, %v1937
    %v1939 = vrcp.pop %v1934
    %v1940 = vmul.f32 1.0, %v1939
    %v1941 = vtanh.pop %v1922
    %v1943 = vrot.slane %v1818, 7
    %v1945 = vmul.f32 %v1938, %v1943
    %v1946 = vmul.f32 %v1936, %v1941
    %v1947 = vadd.f32 %v1945, %v1946
    %v1948 = vtanh.pop %v1947
    %v1949 = vmul.f32 %v1940, %v1948
    %v1950 = vld [vmem:[#allocation5] sm:$0xf]
    %v1951 = vld [vmem:[#allocation5 + $0x4] sm:$0xf]
    %v1952 = vld [vmem:[#allocation5 + $0x8] sm:$0xf]
    %v1953 = vld [vmem:[#allocation5 + $0xc] sm:$0xf]
    %v1954 = vld [vmem:[#allocation5 + $0x10] sm:$0xf]
    %v1955 = vld [vmem:[#allocation5 + $0x14] sm:$0xf]
    %v1956 = vld [vmem:[#allocation5 + $0x18] sm:$0xf]
    %v1957 = vld [vmem:[#allocation5 + $0x1c] sm:$0xf]
    %v1958 = vld [vmem:[#allocation5 + $0x20] sm:$0xf]
    %v1959 = vld [vmem:[#allocation5 + $0x24] sm:$0xf]
    %v1960 = vld [vmem:[#allocation5 + $0x28] sm:$0xf]
    %v1961 = vld [vmem:[#allocation5 + $0x2c] sm:$0xf]
    %v1962 = vld [vmem:[#allocation5 + $0x30] sm:$0xf]
    %v1963 = vld [vmem:[#allocation5 + $0x34] sm:$0xf]
    %v1964 = vld [vmem:[#allocation5 + $0x38] sm:$0xf]
    %v1965 = vld [vmem:[#allocation5 + $0x3c] sm:$0xf]
    %v1966 = vld [vmem:[#allocation5 + $0x40] sm:$0xf]
    %v1967 = vld [vmem:[#allocation5 + $0x44] sm:$0xf]
    %v1968 = vld [vmem:[#allocation5 + $0x48] sm:$0xf]
    %v1969 = vld [vmem:[#allocation5 + $0x4c] sm:$0xf]
    %v1970 = vld [vmem:[#allocation5 + $0x50] sm:$0xf]
    %v1971 = vld [vmem:[#allocation5 + $0x54] sm:$0xf]
    %v1972 = vld [vmem:[#allocation5 + $0x58] sm:$0xf]
    %v1973 = vld [vmem:[#allocation5 + $0x5c] sm:$0xf]
    %v1974 = vld [vmem:[#allocation5 + $0x60] sm:$0xf]
    %v1975 = vld [vmem:[#allocation5 + $0x64] sm:$0xf]
    %v1976 = vld [vmem:[#allocation5 + $0x68] sm:$0xf]
    %v1977 = vld [vmem:[#allocation5 + $0x6c] sm:$0xf]
    %v1978 = vld [vmem:[#allocation5 + $0x70] sm:$0xf]
    %v1979 = vld [vmem:[#allocation5 + $0x74] sm:$0xf]
    %v1980 = vld [vmem:[#allocation5 + $0x78] sm:$0xf]
    %v1981 = vld [vmem:[#allocation5 + $0x7c] sm:$0xf]
    %v1982 = vpack.c.bf16 %v1949, %v1949
    %v1984 = vshrl.u32 %v1982, 16
    %v1986 = vrot.slane %v1984, 1
    %v2004 = vunpack.c.l.b16 %v1950
    %v2005 = vunpack.c.l.b16 %v1951
    %v2006 = vunpack.c.l.b16 %v1952
    %v2007 = vunpack.c.l.b16 %v1953
    %v2008 = vunpack.c.l.b16 %v1954
    %v2009 = vunpack.c.l.b16 %v1955
    %v2010 = vunpack.c.l.b16 %v1956
    %v2011 = vunpack.c.l.b16 %v1957
    %v2012 = vunpack.c.l.b16 %v1958
    %v2013 = vunpack.c.l.b16 %v1959
    %v2014 = vunpack.c.l.b16 %v1960
    %v2015 = vunpack.c.l.b16 %v1961
    %v2016 = vunpack.c.l.b16 %v1962
    %v2017 = vunpack.c.l.b16 %v1963
    %v2018 = vunpack.c.l.b16 %v1964
    %v2019 = vunpack.c.l.b16 %v1965
    %v2020 = vpack.c.b16 %v2005, %v2004
    %v2021 = vpack.c.b16 %v2007, %v2006
    %v2022 = vpack.c.b16 %v2009, %v2008
    %v2023 = vpack.c.b16 %v2011, %v2010
    %v2024 = vpack.c.b16 %v2013, %v2012
    %v2025 = vpack.c.b16 %v2015, %v2014
    %v2026 = vpack.c.b16 %v2017, %v2016
    %v2027 = vpack.c.b16 %v2019, %v2018
    %v2036 = vlaneseq
    %v2037 = vshrl.u32 %v2036, 7
    %v2038 = vsub.s32 5, %v2037
    %v2039 = vrot.slane %v50, %v2038
    %2041 = vmatprep.subr.bf16.mxu0 0
    %2042 = vmatpush1.bf16.msra.mxu0 %v2020
    %2043 = vmatprep.subr.bf16.mxu0 0
    %2044 = vmatpush1.bf16.msra.mxu0 %v2021
    %2045 = vmatprep.subr.bf16.mxu0 0
    %2046 = vmatpush1.bf16.msra.mxu0 %v2022
    %2047 = vmatprep.subr.bf16.mxu0 0
    %2048 = vmatpush1.bf16.msra.mxu0 %v2023
    %2049 = vmatprep.subr.bf16.mxu0 0
    %2050 = vmatpush1.bf16.msra.mxu0 %v2024
    %2051 = vmatprep.subr.bf16.mxu0 0
    %2052 = vmatpush1.bf16.msra.mxu0 %v2025
    %2053 = vmatprep.subr.bf16.mxu0 0
    %2054 = vmatpush1.bf16.msra.mxu0 %v2026
    %2055 = vmatprep.subr.bf16.mxu0 0
    %2056 = vmatpush1.bf16.msra.mxu0 %v2027
    %2057 = vmatprep.subr.bf16.mxu0 0
    %2058 = vmatpush1.bf16.msra.mxu0 0
    %2059 = vmatprep.subr.bf16.mxu0 0
    %2060 = vmatpush1.bf16.msra.mxu0 0
    %2061 = vmatprep.subr.bf16.mxu0 0
    %2062 = vmatpush1.bf16.msra.mxu0 0
    %2063 = vmatprep.subr.bf16.mxu0 0
    %2064 = vmatpush1.bf16.msra.mxu0 0
    %2065 = vmatprep.subr.bf16.mxu0 0
    %2066 = vmatpush1.bf16.msra.mxu0 0
    %2067 = vmatprep.subr.bf16.mxu0 0
    %2068 = vmatpush1.bf16.msra.mxu0 0
    %2069 = vmatprep.subr.bf16.mxu0 0
    %2070 = vmatpush1.bf16.msra.mxu0 0
    %2071 = vmatprep.subr.bf16.mxu0 0
    %2072 = vmatpush1.bf16.msra.mxu0 0
    %2073 = vmatprep.mubr.bf16.mxu0 0
    %2074 = vmatmul.mubr.bf16.gmra.mrb[0].mxu0 %v1986
    %v2075 = vpop.f32.mrb[0].mxu0
    %v2076 = vadd.f32 %v2039, %v2075
    %v2077 = vpop.f32.mrb[0].mxu0
    %v2078 = vpop.f32.mrb[0].mxu0
    %v2079 = vpop.f32.mrb[0].mxu0
    %2080 = vdwg.mxu0
    %v2081 = vmax.f32 %v2076, 0.0
    %v2082 = vpack.c.bf16 %v2081, %v2081
    %v2099 = vunpack.c.l.b16 %v1966
    %v2100 = vunpack.c.l.b16 %v1967
    %v2101 = vunpack.c.l.b16 %v1968
    %v2102 = vunpack.c.l.b16 %v1969
    %v2103 = vunpack.c.l.b16 %v1970
    %v2104 = vunpack.c.l.b16 %v1971
    %v2105 = vunpack.c.l.b16 %v1972
    %v2106 = vunpack.c.l.b16 %v1973
    %v2107 = vunpack.c.l.b16 %v1974
    %v2108 = vunpack.c.l.b16 %v1975
    %v2109 = vunpack.c.l.b16 %v1976
    %v2110 = vunpack.c.l.b16 %v1977
    %v2111 = vunpack.c.l.b16 %v1978
    %v2112 = vunpack.c.l.b16 %v1979
    %v2113 = vunpack.c.l.b16 %v1980
    %v2114 = vunpack.c.l.b16 %v1981
    %v2115 = vpack.c.b16 %v2100, %v2099
    %v2116 = vpack.c.b16 %v2102, %v2101
    %v2117 = vpack.c.b16 %v2104, %v2103
    %v2118 = vpack.c.b16 %v2106, %v2105
    %v2119 = vpack.c.b16 %v2108, %v2107
    %v2120 = vpack.c.b16 %v2110, %v2109
    %v2121 = vpack.c.b16 %v2112, %v2111
    %v2122 = vpack.c.b16 %v2114, %v2113
    %v2131 = vlaneseq
    %v2132 = vshrl.u32 %v2131, 7
    %v2133 = vsub.s32 7, %v2132
    %v2134 = vrot.slane %v50, %v2133
    %2136 = vmatprep.subr.bf16.mxu0 0
    %2137 = vmatpush1.bf16.msra.mxu0 %v2115
    %2138 = vmatprep.subr.bf16.mxu0 0
    %2139 = vmatpush1.bf16.msra.mxu0 %v2116
    %2140 = vmatprep.subr.bf16.mxu0 0
    %2141 = vmatpush1.bf16.msra.mxu0 %v2117
    %2142 = vmatprep.subr.bf16.mxu0 0
    %2143 = vmatpush1.bf16.msra.mxu0 %v2118
    %2144 = vmatprep.subr.bf16.mxu0 0
    %2145 = vmatpush1.bf16.msra.mxu0 %v2119
    %2146 = vmatprep.subr.bf16.mxu0 0
    %2147 = vmatpush1.bf16.msra.mxu0 %v2120
    %2148 = vmatprep.subr.bf16.mxu0 0
    %2149 = vmatpush1.bf16.msra.mxu0 %v2121
    %2150 = vmatprep.subr.bf16.mxu0 0
    %2151 = vmatpush1.bf16.msra.mxu0 %v2122
    %2152 = vmatprep.subr.bf16.mxu0 0
    %2153 = vmatpush1.bf16.msra.mxu0 0
    %2154 = vmatprep.subr.bf16.mxu0 0
    %2155 = vmatpush1.bf16.msra.mxu0 0
    %2156 = vmatprep.subr.bf16.mxu0 0
    %2157 = vmatpush1.bf16.msra.mxu0 0
    %2158 = vmatprep.subr.bf16.mxu0 0
    %2159 = vmatpush1.bf16.msra.mxu0 0
    %2160 = vmatprep.subr.bf16.mxu0 0
    %2161 = vmatpush1.bf16.msra.mxu0 0
    %2162 = vmatprep.subr.bf16.mxu0 0
    %2163 = vmatpush1.bf16.msra.mxu0 0
    %2164 = vmatprep.subr.bf16.mxu0 0
    %2165 = vmatpush1.bf16.msra.mxu0 0
    %2166 = vmatprep.subr.bf16.mxu0 0
    %2167 = vmatpush1.bf16.msra.mxu0 0
    %2168 = vmatprep.mubr.bf16.mxu0 0
    %2169 = vmatmul.mubr.bf16.gmra.mrb[0].mxu0 %v2082
    %v2170 = vpop.f32.mrb[0].mxu0
    %v2171 = vadd.f32 %v2134, %v2170
    %v2172 = vpop.f32.mrb[0].mxu0
    %v2173 = vpop.f32.mrb[0].mxu0
    %v2174 = vpop.f32.mrb[0].mxu0
    %2175 = vdwg.mxu0
    %vm2176 = vcmask 24576
    %2177 = vst.msk [vmem:[#allocation7] sm:$0x1] %vm2176, %v2171
    // Predicated region
    $region30: #{lstm_xml_forward.1} parent=1 // pred_check
      _
    $region31: #{lstm_xml_forward.1} parent=1 // pred_check_branch
      %2179 = sbr.rel (0) target = $region33
    $region32: #{lstm_xml_forward.1} parent=1 // pred_region
      %s2181 = ssub.s32 16, 16
      %2182 = vsyncadd [#allocation4], %s2181
      %s2184 = sshll.u32 [#allocation7], 4
      %s2185 = int_to_ptr.vmem [resolvable:$true] %s2184
      %2187 = dma.vmem_to_hbm [thread:$0]  %s2185, 16, %s5, [#allocation4]
    $region33: #{lstm_xml_forward.1} parent=1 // pred_fallthru
      _
    // Predicated region
    $region34: #{lstm_xml_forward.1} parent=1 // pred_check
      _
    $region35: #{lstm_xml_forward.1} parent=1 // pred_check_branch
      %2189 = sbr.rel (0) target = $region37
    $region36: #{lstm_xml_forward.1} parent=1 // pred_region
      %2190 = dma.done [#allocation4], 16
    $region37: #{lstm_xml_forward.1} parent=1 // pred_fallthru
      _
    %2191 = vsyncpa [#allocation3], 1
    %2192 = vsyncpa [#allocation6], 1
    %2193 = vsyncpa [#allocation4], 1

</llo_original>
